<compile_context>
chip_gen: v7x
topology: tpu7x:2x2x1
jax: 0.10.0
libtpu: 0.0.40
codegen_flags: <defaults>
</compile_context>

<pallas_src>
import functools
import math

import jax
import jax.numpy as jnp
from jax.experimental import pallas as pl
from jax.experimental.pallas import tpu as pltpu

_LN_EPS = 1e-5          # PyTorch default for nn.LayerNorm / TransformerEncoderLayer
_MASK_NEG = -1e30       # additive key-padding mask value


# ----------------------------- in-kernel math -------------------------------

def _erf_kernel(x):
    # Abramowitz & Stegun 7.1.26 (|err| <= 1.5e-7): matches PyTorch exact-erf
    # GELU to fp32 precision. 1/(1+p*ax) uses the approx EUP reciprocal.
    a1, a2, a3, a4, a5 = (0.254829592, -0.284496736, 1.421413741,
                          -1.453152027, 1.061405429)
    p = 0.3275911
    sgn = jnp.where(x >= 0.0, 1.0, -1.0)
    ax = jnp.abs(x)
    t = pl.reciprocal(1.0 + p * ax, approx=True)
    poly = ((((a5 * t + a4) * t + a3) * t + a2) * t + a1) * t
    return sgn * (1.0 - poly * jnp.exp(-ax * ax))


def _gelu_exact_kernel(x):
    return 0.5 * x * (1.0 + _erf_kernel(x * (1.0 / math.sqrt(2.0))))


def _layer_norm(x, gamma, beta):
    mu = jnp.mean(x, axis=-1, keepdims=True)
    var = jnp.mean(jnp.square(x - mu), axis=-1, keepdims=True)
    return (x - mu) * jax.lax.rsqrt(var + _LN_EPS) * gamma + beta


# ------------------------------- fused kernel --------------------------------

def _fused_kernel(nhead, seq_true,
                  emb_ref, mask_ref,
                  wqkv_ref, bqkv_ref, wo_ref, bo_ref,
                  g1_ref, be1_ref, w1_ref, b1_ref, w2_ref, b2_ref,
                  g2_ref, be2_ref, lng_ref, lnb_ref,
                  o_ref, hid_ref):
    l = pl.program_id(1)
    n_layers = pl.num_programs(1)
    Bc, S1p, H = hid_ref.shape
    hd = H // nhead
    bf16 = jnp.bfloat16

    # ---- layer 0: load the pre-embedded (proj + CLS + pos) slab -------------
    @pl.when(l == 0)
    def _init():
        hid_ref[...] = emb_ref[...]
        # TODO(synk): nn.Dropout is identity here (inference / eval mode).

    x3 = hid_ref[...]                                    # (Bc, S1p, H) f32
    x2 = x3.reshape(Bc * S1p, H)
    xb = x2.astype(bf16)

    # ---- self-attention: one lane-dense QKV matmul over the packed slab -----
    # 1/sqrt(hd) is pre-folded into the Q columns of wqkv / bqkv.
    qkv = jnp.dot(xb, wqkv_ref[0], preferred_element_type=jnp.float32) + bqkv_ref[0]
    q3 = qkv[:, :H].reshape(Bc, S1p, H).astype(bf16)
    k3 = qkv[:, H:2 * H].reshape(Bc, S1p, H).astype(bf16)
    v3 = qkv[:, 2 * H:].reshape(Bc, S1p, H).astype(bf16)

    madd = mask_ref[...]                                 # (Bc, 1, S1p) f32, hoisted

    heads = []
    for h in range(nhead):
        cols = slice(h * hd, (h + 1) * hd)
        s = jnp.einsum('bqd,bkd->bqk', q3[..., cols], k3[..., cols],
                       preferred_element_type=jnp.float32) + madd       # (Bc,S1p,S1p)
        s = s - jnp.max(s, axis=-1, keepdims=True)
        p = jnp.exp(s)
        # CLS key is never masked -> row sum >= 1, approx reciprocal is safe.
        p = p * pl.reciprocal(jnp.sum(p, axis=-1, keepdims=True), approx=True)
        heads.append(jnp.einsum('bqk,bkd->bqd', p.astype(bf16), v3[..., cols],
                                preferred_element_type=jnp.float32))
    attn3 = jnp.concatenate(heads, axis=-1)              # (Bc, S1p, H) f32, in-register

    # Single out-projection over all heads / rows.
    attn = jnp.dot(attn3.reshape(Bc * S1p, H).astype(bf16), wo_ref[0],
                   preferred_element_type=jnp.float32) + bo_ref[0]
    y = _layer_norm(x2 + attn, g1_ref[0], be1_ref[0])                   # post-norm 1

    # ---- feed-forward (exact-erf GELU) on the packed slab --------------------
    ff = jnp.dot(y.astype(bf16), w1_ref[0], preferred_element_type=jnp.float32) + b1_ref[0]
    ff = _gelu_exact_kernel(ff)
    ff = jnp.dot(ff.astype(bf16), w2_ref[0], preferred_element_type=jnp.float32) + b2_ref[0]
    xo = _layer_norm(y + ff, g2_ref[0], be2_ref[0])                     # post-norm 2
    hid_ref[...] = xo.reshape(Bc, S1p, H)

    # ---- last layer: final LayerNorm + masked mean over the true sequence ---
    @pl.when(l == n_layers - 1)
    def _final():
        ln = _layer_norm(xo, lng_ref[...], lnb_ref[...]).reshape(Bc, S1p, H)
        row_idx = jax.lax.broadcasted_iota(jnp.int32, (1, S1p, 1), 1)
        rowmask = (row_idx < seq_true).astype(jnp.float32)
        o_ref[...] = jnp.sum(ln * rowmask, axis=1, keepdims=True) * (1.0 / seq_true)


# ------------------------------- wrapper --------------------------------------

def vision_encoder_forward(p, vision, key_padding_mask, nhead, *, batch_splits=None):
    """VisionEncoder.forward(vision, key_padding_mask) -> (B, 1, H)."""
    B, S, F = vision.shape
    H = p["proj_w"].shape[1]
    L = p["wqkv"].shape[0]
    FF = p["w1"].shape[2]
    S1 = S + 1
    S1p = ((S1 + 7) // 8) * 8                       # sublane-aligned padded seq length

    if batch_splits is None:
        batch_splits = 2 if (B % 2 == 0 and B >= 2) else 1
    assert B % batch_splits == 0
    Bc = B // batch_splits

    # --- PositionEncodingTraining done once in plain XLA (tiny one-time op;
    #     keeps the non-aligned F contraction dim out of the kernel) ----------
    proj = jnp.matmul(vision, p["proj_w"]) + p["proj_b"]                 # (B, S, H)
    cls = jnp.broadcast_to(p["cls_pos0"][None], (B, 1, H))
    emb = jnp.concatenate([cls, proj + p["pos_rest"][None]], axis=1)     # (B, S1, H)
    emb = jnp.pad(emb, ((0, 0), (0, S1p - S1), (0, 0)))                  # zero rows, finite
    # TODO(synk): nn.Dropout is identity here (inference / eval mode).

    kpm = jnp.pad(key_padding_mask, ((0, 0), (0, S1p - S1)), constant_values=True)
    mask_add = jnp.where(kpm, jnp.float32(_MASK_NEG),
                         jnp.float32(0.0)).reshape(B, 1, S1p)

    def chunk(shape):
        n = len(shape)
        return pl.BlockSpec(shape, lambda c, l, _n=n: (c,) + (0,) * (_n - 1))

    def per_layer(shape):
        n = len(shape)
        return pl.BlockSpec((1,) + tuple(shape), lambda c, l, _n=n: (l,) + (0,) * _n)

    def full(shape):
        n = len(shape)
        return pl.BlockSpec(shape, lambda c, l, _n=n: (0,) * _n)

    kern = functools.partial(_fused_kernel, nhead, S1)
    return pl.pallas_call(
        kern,
        grid=(batch_splits, L),
        in_specs=[
            chunk((Bc, S1p, H)), chunk((Bc, 1, S1p)),
            per_layer((H, 3 * H)), per_layer((1, 3 * H)),
            per_layer((H, H)), per_layer((1, H)),
            per_layer((1, H)), per_layer((1, H)),
            per_layer((H, FF)), per_layer((1, FF)),
            per_layer((FF, H)), per_layer((1, H)),
            per_layer((1, H)), per_layer((1, H)),
            full((1, H)), full((1, H)),
        ],
        out_specs=chunk((Bc, 1, H)),
        out_shape=jax.ShapeDtypeStruct((B, 1, H), jnp.float32),
        scratch_shapes=[pltpu.VMEM((Bc, S1p, H), jnp.float32)],   # resident hidden state
        compiler_params=pltpu.CompilerParams(
            dimension_semantics=("parallel", "arbitrary"),
            vmem_limit_bytes=64 * 1024 * 1024),
    )(emb, mask_add,
      p["wqkv"], p["bqkv"], p["wo"], p["bo"], p["g1"], p["be1"],
      p["w1"], p["b1"], p["w2"], p["b2"], p["g2"], p["be2"],
      p["ln_g"], p["ln_b"])


# --------------------------- parameters ---------------------------------------

def _dense_init(key, fan_in, fan_out):
    # PyTorch nn.Linear default init; weights stored pre-transposed as (in, out).
    kw, kb = jax.random.split(key)
    bound = 1.0 / math.sqrt(fan_in)
    w = jax.random.uniform(kw, (fan_in, fan_out), jnp.float32, -bound, bound)
    b = jax.random.uniform(kb, (1, fan_out), jnp.float32, -bound, bound)
    return w, b


def init_params(key, fea_size, hidden, ffn, num_layers, num_patches):
    keys = jax.random.split(key, 1 + num_layers)
    proj_w, proj_b = _dense_init(keys[0], fea_size, hidden)
    pos_enc = dict(
        proj_w=proj_w, proj_b=proj_b,
        cls=jnp.ones((1, hidden), jnp.float32),                  # torch.ones(1,1,H)
        pos=jnp.zeros((num_patches + 1, hidden), jnp.float32),   # torch.zeros(1,P+1,H)
    )
    layers = []
    for i in range(num_layers):
        lk = jax.random.split(keys[1 + i], 4)
        wqkv, bqkv = _dense_init(lk[0], hidden, 3 * hidden)
        wo, bo = _dense_init(lk[1], hidden, hidden)
        w1, b1 = _dense_init(lk[2], hidden, ffn)
        w2, b2 = _dense_init(lk[3], ffn, hidden)
        layers.append(dict(
            wqkv=wqkv, bqkv=bqkv, wo=wo, bo=bo,
            w1=w1, b1=b1, w2=w2, b2=b2,
            g1=jnp.ones((1, hidden), jnp.float32), be1=jnp.zeros((1, hidden), jnp.float32),
            g2=jnp.ones((1, hidden), jnp.float32), be2=jnp.zeros((1, hidden), jnp.float32),
        ))
    return dict(pos_enc=pos_enc, layers=layers,
                ln_g=jnp.ones((1, hidden), jnp.float32),
                ln_b=jnp.zeros((1, hidden), jnp.float32))


def prepare_params(params, nhead):
    """One-time transform: stack per-layer weights along L (matmul weights in
    bf16 for the MXU / halved weight DMA), fold 1/sqrt(hd) into the Q columns."""
    pe = params["pos_enc"]
    H = pe["proj_w"].shape[1]
    hd = H // nhead
    scale = 1.0 / math.sqrt(hd)
    col_scale = jnp.concatenate([jnp.full((H,), scale, jnp.float32),
                                 jnp.ones((2 * H,), jnp.float32)])

    def stack(name, dtype=jnp.float32):
        return jnp.stack([lp[name] for lp in params["layers"]], axis=0).astype(dtype)

    return dict(
        proj_w=pe["proj_w"], proj_b=pe["proj_b"],
        cls_pos0=pe["cls"] + pe["pos"][0:1, :],
        pos_rest=pe["pos"][1:, :],
        wqkv=(stack("wqkv") * col_scale).astype(jnp.bfloat16),
        bqkv=stack("bqkv") * col_scale,
        wo=stack("wo", jnp.bfloat16), bo=stack("bo"),
        g1=stack("g1"), be1=stack("be1"),
        w1=stack("w1", jnp.bfloat16), b1=stack("b1"),
        w2=stack("w2", jnp.bfloat16), b2=stack("b2"),
        g2=stack("g2"), be2=stack("be2"),
        ln_g=params["ln_g"], ln_b=params["ln_b"],
    )


# --------------------------- pure-JAX reference --------------------------------

def reference_forward(params, vision, key_padding_mask, nhead):
    pe = params["pos_enc"]
    B, S, _ = vision.shape
    H = pe["proj_w"].shape[1]
    hd = H // nhead
    x = jnp.matmul(vision, pe["proj_w"]) + pe["proj_b"]                # (B,S,H)
    cls = jnp.broadcast_to(pe["cls"], (B, 1, H))
    x = jnp.concatenate([cls, x], axis=1) + pe["pos"][None]            # (B,S1,H)
    mask = jnp.where(key_padding_mask, _MASK_NEG, 0.0).astype(jnp.float32)[:, None, :]
    for lp in params["layers"]:
        qkv = jnp.matmul(x, lp["wqkv"]) + lp["bqkv"]
        q, k, v = qkv[..., :H], qkv[..., H:2 * H], qkv[..., 2 * H:]
        heads = []
        for h in range(nhead):
            sl = slice(h * hd, (h + 1) * hd)
            s = jnp.einsum('bqd,bkd->bqk', q[..., sl], k[..., sl]) / math.sqrt(hd) + mask
            p = jax.nn.softmax(s, axis=-1)
            heads.append(jnp.einsum('bqk,bkd->bqd', p, v[..., sl]))
        attn = jnp.matmul(jnp.concatenate(heads, axis=-1), lp["wo"]) + lp["bo"]
        y = _layer_norm(x + attn, lp["g1"], lp["be1"])
        ff = jax.nn.gelu(jnp.matmul(y, lp["w1"]) + lp["b1"], approximate=False)
        x = _layer_norm(y + jnp.matmul(ff, lp["w2"]) + lp["b2"], lp["g2"], lp["be2"])
    x = _layer_norm(x, params["ln_g"], params["ln_b"])
    return jnp.mean(x, axis=1, keepdims=True)


# --------------------------------- main ---------------------------------------

if __name__ == "__main__":
    B, S, F, H, FF, NHEAD, NLAYERS = 2, 8, 20, 32, 32, 4, 2

    key = jax.random.PRNGKey(0)
    kparam, kvis = jax.random.split(key)

    raw_params = init_params(kparam, fea_size=F, hidden=H, ffn=FF,
                             num_layers=NLAYERS, num_patches=S)
    prepped = prepare_params(raw_params, NHEAD)
    vision = jax.random.normal(kvis, (B, S, F), dtype=jnp.float32)

    # key_padding_mask over the CLS-prepended sequence: True = ignore key.
    kpm = jnp.zeros((B, S + 1), dtype=bool)
    kpm = kpm.at[1, -2:].set(True)

    out = vision_encoder_forward(prepped, vision, kpm, NHEAD)
    out = jax.block_until_ready(out)

    assert out.shape == (B, 1, H), out.shape
    assert bool(jnp.all(jnp.isfinite(out)))

    ref = reference_forward(raw_params, vision, kpm, NHEAD)
    max_err = float(jnp.max(jnp.abs(out - ref)))
    # bf16 matmuls (f32 accumulation) -> a few 1e-3..1e-2 absolute error budget.
    assert bool(jnp.allclose(out, ref, atol=5e-2, rtol=5e-2)), max_err

    print("KERNEL_OK")
</pallas_src>

<mosaic_0001>
module attributes {stable_mosaic.version = 11 : i64} {
  func.func @_fused_kernel(%arg0: i32, %arg1: i32, %arg2: memref<1x16x32xf32, #tpu.memory_space<vmem>>, %arg3: memref<1x1x16xf32, #tpu.memory_space<vmem>>, %arg4: memref<1x32x96xbf16, #tpu.memory_space<vmem>>, %arg5: memref<1x1x96xf32, #tpu.memory_space<vmem>>, %arg6: memref<1x32x32xbf16, #tpu.memory_space<vmem>>, %arg7: memref<1x1x32xf32, #tpu.memory_space<vmem>>, %arg8: memref<1x1x32xf32, #tpu.memory_space<vmem>>, %arg9: memref<1x1x32xf32, #tpu.memory_space<vmem>>, %arg10: memref<1x32x32xbf16, #tpu.memory_space<vmem>>, %arg11: memref<1x1x32xf32, #tpu.memory_space<vmem>>, %arg12: memref<1x32x32xbf16, #tpu.memory_space<vmem>>, %arg13: memref<1x1x32xf32, #tpu.memory_space<vmem>>, %arg14: memref<1x1x32xf32, #tpu.memory_space<vmem>>, %arg15: memref<1x1x32xf32, #tpu.memory_space<vmem>>, %arg16: memref<1x32xf32, #tpu.memory_space<vmem>>, %arg17: memref<1x32xf32, #tpu.memory_space<vmem>>, %arg18: memref<1x1x32xf32, #tpu.memory_space<vmem>>, %arg19: memref<1x16x32xf32, #tpu.memory_space<vmem>>) attributes {dimension_semantics = [#tpu.dimension_semantics<parallel>, #tpu.dimension_semantics<arbitrary>], iteration_bounds = array<i64: 2, 2>, scalar_prefetch = 0 : i64, scratch_operands = 1 : i64, tpu.core_type = #tpu.core_type<tc>, window_params = [{transform_indices = @transform_0, window_bounds = array<i64: 1, 16, 32>}, {transform_indices = @transform_1, window_bounds = array<i64: 1, 1, 16>}, {transform_indices = @transform_2, window_bounds = array<i64: 1, 32, 96>}, {transform_indices = @transform_3, window_bounds = array<i64: 1, 1, 96>}, {transform_indices = @transform_4, window_bounds = array<i64: 1, 32, 32>}, {transform_indices = @transform_5, window_bounds = array<i64: 1, 1, 32>}, {transform_indices = @transform_6, window_bounds = array<i64: 1, 1, 32>}, {transform_indices = @transform_7, window_bounds = array<i64: 1, 1, 32>}, {transform_indices = @transform_8, window_bounds = array<i64: 1, 32, 32>}, {transform_indices = @transform_9, window_bounds = array<i64: 1, 1, 32>}, {transform_indices = @transform_10, window_bounds = array<i64: 1, 32, 32>}, {transform_indices = @transform_11, window_bounds = array<i64: 1, 1, 32>}, {transform_indices = @transform_12, window_bounds = array<i64: 1, 1, 32>}, {transform_indices = @transform_13, window_bounds = array<i64: 1, 1, 32>}, {pipeline_mode = #tpu.pipeline_mode<synchronous>, transform_indices = @transform_14, window_bounds = array<i64: 1, 32>}, {pipeline_mode = #tpu.pipeline_mode<synchronous>, transform_indices = @transform_15, window_bounds = array<i64: 1, 32>}, {transform_indices = @transform_16, window_bounds = array<i64: 1, 1, 32>}]} {
    %c0_i32 = arith.constant 0 : i32
    %0 = arith.cmpi eq, %arg1, %c0_i32 : i32
    %1 = arith.extui %0 : i1 to i32
    %c0_i32_0 = arith.constant 0 : i32
    %2 = arith.cmpi ne, %1, %c0_i32_0 : i32
    scf.if %2 {
      %c0_90 = arith.constant 0 : index
      %c0_91 = arith.constant 0 : index
      %c0_92 = arith.constant 0 : index
      %220 = vector.load %arg2[%c0_90, %c0_91, %c0_92] : memref<1x16x32xf32, #tpu.memory_space<vmem>>, vector<1x16x32xf32>
      %c0_93 = arith.constant 0 : index
      %c0_94 = arith.constant 0 : index
      %c0_95 = arith.constant 0 : index
      %221 = vector.load %arg19[%c0_93, %c0_94, %c0_95] : memref<1x16x32xf32, #tpu.memory_space<vmem>>, vector<1x16x32xf32>
      tpu.vector_store %arg19[%c0_93, %c0_94, %c0_95], %220 {strides = array<i32>} : memref<1x16x32xf32, #tpu.memory_space<vmem>>, vector<1x16x32xf32>,
    } else {
    }
    %c0 = arith.constant 0 : index
    %c0_1 = arith.constant 0 : index
    %c0_2 = arith.constant 0 : index
    %3 = vector.load %arg19[%c0, %c0_1, %c0_2] : memref<1x16x32xf32, #tpu.memory_space<vmem>>, vector<1x16x32xf32>
    %4 = vector.shape_cast %3 : vector<1x16x32xf32> to vector<16x32xf32>
    %5 = arith.truncf %4 : vector<16x32xf32> to vector<16x32xbf16>
    %c0_3 = arith.constant 0 : index
    %c0_4 = arith.constant 0 : index
    %c0_5 = arith.constant 0 : index
    %6 = vector.load %arg4[%c0_3, %c0_4, %c0_5] : memref<1x32x96xbf16, #tpu.memory_space<vmem>>, vector<1x32x96xbf16>
    %7 = vector.shape_cast %6 : vector<1x32x96xbf16> to vector<32x96xbf16>
    %cst = arith.constant dense<0.000000e+00> : vector<16x96xf32>
    %8 = tpu.matmul %5, %7, %cst {dimension_numbers = #tpu.dot_dimension_numbers<[1], [0], [0], [1], [0, 0, 1, 1], [], []>} : vector<16x32xbf16>, vector<32x96xbf16>, vector<16x96xf32> -> vector<16x96xf32>
    %c0_6 = arith.constant 0 : index
    %c0_7 = arith.constant 0 : index
    %c0_8 = arith.constant 0 : index
    %9 = vector.load %arg5[%c0_6, %c0_7, %c0_8] : memref<1x1x96xf32, #tpu.memory_space<vmem>>, vector<1x1x96xf32>
    %10 = vector.shape_cast %9 : vector<1x1x96xf32> to vector<1x96xf32>
    %11 = vector.broadcast %10 : vector<1x96xf32> to vector<16x96xf32>
    %12 = arith.addf %8, %11 : vector<16x96xf32>
    %13 = vector.extract_strided_slice %12 {offsets = [0, 0], sizes = [16, 32], strides = [1, 1]} : vector<16x96xf32> to vector<16x32xf32>
    %14 = vector.shape_cast %13 : vector<16x32xf32> to vector<1x16x32xf32>
    %15 = arith.truncf %14 : vector<1x16x32xf32> to vector<1x16x32xbf16>
    %16 = vector.extract_strided_slice %12 {offsets = [0, 32], sizes = [16, 32], strides = [1, 1]} : vector<16x96xf32> to vector<16x32xf32>
    %17 = vector.shape_cast %16 : vector<16x32xf32> to vector<1x16x32xf32>
    %18 = arith.truncf %17 : vector<1x16x32xf32> to vector<1x16x32xbf16>
    %19 = vector.extract_strided_slice %12 {offsets = [0, 64], sizes = [16, 32], strides = [1, 1]} : vector<16x96xf32> to vector<16x32xf32>
    %20 = vector.shape_cast %19 : vector<16x32xf32> to vector<1x16x32xf32>
    %21 = arith.truncf %20 : vector<1x16x32xf32> to vector<1x16x32xbf16>
    %c0_9 = arith.constant 0 : index
    %c0_10 = arith.constant 0 : index
    %c0_11 = arith.constant 0 : index
    %22 = vector.load %arg3[%c0_9, %c0_10, %c0_11] : memref<1x1x16xf32, #tpu.memory_space<vmem>>, vector<1x1x16xf32>
    %23 = vector.extract_strided_slice %15 {offsets = [0, 0, 0], sizes = [1, 16, 8], strides = [1, 1, 1]} : vector<1x16x32xbf16> to vector<1x16x8xbf16>
    %24 = vector.extract_strided_slice %18 {offsets = [0, 0, 0], sizes = [1, 16, 8], strides = [1, 1, 1]} : vector<1x16x32xbf16> to vector<1x16x8xbf16>
    "tpu.trace_start"() <{level = 10 : i32, message = "bqd,bkd->bqk"}> : () -> ()
    %cst_12 = arith.constant dense<0.000000e+00> : vector<1x16x16xf32>
    %25 = tpu.matmul %23, %24, %cst_12 {dimension_numbers = #tpu.dot_dimension_numbers<[2], [2], [1], [1], [0, 0, 0, 1, 1, 1], [0], [0]>} : vector<1x16x8xbf16>, vector<1x16x8xbf16>, vector<1x16x16xf32> -> vector<1x16x16xf32>
    "tpu.trace_stop"() : () -> ()
    %26 = vector.broadcast %22 : vector<1x1x16xf32> to vector<1x16x16xf32>
    %27 = arith.addf %25, %26 : vector<1x16x16xf32>
    %cst_13 = arith.constant dense<0xFF800000> : vector<1x16xf32>
    %28 = vector.multi_reduction <maximumf>, %27, %cst_13 [2] : vector<1x16x16xf32> to vector<1x16xf32>
    %29 = vector.shape_cast %28 : vector<1x16xf32> to vector<1x16x1xf32>
    %30 = vector.broadcast %29 : vector<1x16x1xf32> to vector<1x16x16xf32>
    %31 = arith.subf %27, %30 : vector<1x16x16xf32>
    %32 = math.exp %31 : vector<1x16x16xf32>
    %cst_14 = arith.constant dense<0.000000e+00> : vector<1x16xf32>
    %33 = vector.multi_reduction <add>, %32, %cst_14 [2] : vector<1x16x16xf32> to vector<1x16xf32>
    %34 = vector.shape_cast %33 : vector<1x16xf32> to vector<1x16x1xf32>
    %35 = tpu.reciprocal %34 {approx = true} : vector<1x16x1xf32> -> vector<1x16x1xf32>
    %36 = vector.broadcast %35 : vector<1x16x1xf32> to vector<1x16x16xf32>
    %37 = arith.mulf %32, %36 : vector<1x16x16xf32>
    %38 = arith.truncf %37 : vector<1x16x16xf32> to vector<1x16x16xbf16>
    %39 = vector.extract_strided_slice %21 {offsets = [0, 0, 0], sizes = [1, 16, 8], strides = [1, 1, 1]} : vector<1x16x32xbf16> to vector<1x16x8xbf16>
    "tpu.trace_start"() <{level = 10 : i32, message = "bqk,bkd->bqd"}> : () -> ()
    %cst_15 = arith.constant dense<0.000000e+00> : vector<1x16x8xf32>
    %40 = tpu.matmul %38, %39, %cst_15 {dimension_numbers = #tpu.dot_dimension_numbers<[2], [1], [1], [2], [0, 0, 0, 1, 1, 2], [0], [0]>} : vector<1x16x16xbf16>, vector<1x16x8xbf16>, vector<1x16x8xf32> -> vector<1x16x8xf32>
    "tpu.trace_stop"() : () -> ()
    %41 = vector.extract_strided_slice %15 {offsets = [0, 0, 8], sizes = [1, 16, 8], strides = [1, 1, 1]} : vector<1x16x32xbf16> to vector<1x16x8xbf16>
    %42 = vector.extract_strided_slice %18 {offsets = [0, 0, 8], sizes = [1, 16, 8], strides = [1, 1, 1]} : vector<1x16x32xbf16> to vector<1x16x8xbf16>
    "tpu.trace_start"() <{level = 10 : i32, message = "bqd,bkd->bqk"}> : () -> ()
    %cst_16 = arith.constant dense<0.000000e+00> : vector<1x16x16xf32>
    %43 = tpu.matmul %41, %42, %cst_16 {dimension_numbers = #tpu.dot_dimension_numbers<[2], [2], [1], [1], [0, 0, 0, 1, 1, 1], [0], [0]>} : vector<1x16x8xbf16>, vector<1x16x8xbf16>, vector<1x16x16xf32> -> vector<1x16x16xf32>
    "tpu.trace_stop"() : () -> ()
    %44 = vector.broadcast %22 : vector<1x1x16xf32> to vector<1x16x16xf32>
    %45 = arith.addf %43, %44 : vector<1x16x16xf32>
    %cst_17 = arith.constant dense<0xFF800000> : vector<1x16xf32>
    %46 = vector.multi_reduction <maximumf>, %45, %cst_17 [2] : vector<1x16x16xf32> to vector<1x16xf32>
    %47 = vector.shape_cast %46 : vector<1x16xf32> to vector<1x16x1xf32>
    %48 = vector.broadcast %47 : vector<1x16x1xf32> to vector<1x16x16xf32>
    %49 = arith.subf %45, %48 : vector<1x16x16xf32>
    %50 = math.exp %49 : vector<1x16x16xf32>
    %cst_18 = arith.constant dense<0.000000e+00> : vector<1x16xf32>
    %51 = vector.multi_reduction <add>, %50, %cst_18 [2] : vector<1x16x16xf32> to vector<1x16xf32>
    %52 = vector.shape_cast %51 : vector<1x16xf32> to vector<1x16x1xf32>
    %53 = tpu.reciprocal %52 {approx = true} : vector<1x16x1xf32> -> vector<1x16x1xf32>
    %54 = vector.broadcast %53 : vector<1x16x1xf32> to vector<1x16x16xf32>
    %55 = arith.mulf %50, %54 : vector<1x16x16xf32>
    %56 = arith.truncf %55 : vector<1x16x16xf32> to vector<1x16x16xbf16>
    %57 = vector.extract_strided_slice %21 {offsets = [0, 0, 8], sizes = [1, 16, 8], strides = [1, 1, 1]} : vector<1x16x32xbf16> to vector<1x16x8xbf16>
    "tpu.trace_start"() <{level = 10 : i32, message = "bqk,bkd->bqd"}> : () -> ()
    %cst_19 = arith.constant dense<0.000000e+00> : vector<1x16x8xf32>
    %58 = tpu.matmul %56, %57, %cst_19 {dimension_numbers = #tpu.dot_dimension_numbers<[2], [1], [1], [2], [0, 0, 0, 1, 1, 2], [0], [0]>} : vector<1x16x16xbf16>, vector<1x16x8xbf16>, vector<1x16x8xf32> -> vector<1x16x8xf32>
    "tpu.trace_stop"() : () -> ()
    %59 = vector.extract_strided_slice %15 {offsets = [0, 0, 16], sizes = [1, 16, 8], strides = [1, 1, 1]} : vector<1x16x32xbf16> to vector<1x16x8xbf16>
    %60 = vector.extract_strided_slice %18 {offsets = [0, 0, 16], sizes = [1, 16, 8], strides = [1, 1, 1]} : vector<1x16x32xbf16> to vector<1x16x8xbf16>
    "tpu.trace_start"() <{level = 10 : i32, message = "bqd,bkd->bqk"}> : () -> ()
    %cst_20 = arith.constant dense<0.000000e+00> : vector<1x16x16xf32>
    %61 = tpu.matmul %59, %60, %cst_20 {dimension_numbers = #tpu.dot_dimension_numbers<[2], [2], [1], [1], [0, 0, 0, 1, 1, 1], [0], [0]>} : vector<1x16x8xbf16>, vector<1x16x8xbf16>, vector<1x16x16xf32> -> vector<1x16x16xf32>
    "tpu.trace_stop"() : () -> ()
    %62 = vector.broadcast %22 : vector<1x1x16xf32> to vector<1x16x16xf32>
    %63 = arith.addf %61, %62 : vector<1x16x16xf32>
    %cst_21 = arith.constant dense<0xFF800000> : vector<1x16xf32>
    %64 = vector.multi_reduction <maximumf>, %63, %cst_21 [2] : vector<1x16x16xf32> to vector<1x16xf32>
    %65 = vector.shape_cast %64 : vector<1x16xf32> to vector<1x16x1xf32>
    %66 = vector.broadcast %65 : vector<1x16x1xf32> to vector<1x16x16xf32>
    %67 = arith.subf %63, %66 : vector<1x16x16xf32>
    %68 = math.exp %67 : vector<1x16x16xf32>
    %cst_22 = arith.constant dense<0.000000e+00> : vector<1x16xf32>
    %69 = vector.multi_reduction <add>, %68, %cst_22 [2] : vector<1x16x16xf32> to vector<1x16xf32>
    %70 = vector.shape_cast %69 : vector<1x16xf32> to vector<1x16x1xf32>
    %71 = tpu.reciprocal %70 {approx = true} : vector<1x16x1xf32> -> vector<1x16x1xf32>
    %72 = vector.broadcast %71 : vector<1x16x1xf32> to vector<1x16x16xf32>
    %73 = arith.mulf %68, %72 : vector<1x16x16xf32>
    %74 = arith.truncf %73 : vector<1x16x16xf32> to vector<1x16x16xbf16>
    %75 = vector.extract_strided_slice %21 {offsets = [0, 0, 16], sizes = [1, 16, 8], strides = [1, 1, 1]} : vector<1x16x32xbf16> to vector<1x16x8xbf16>
    "tpu.trace_start"() <{level = 10 : i32, message = "bqk,bkd->bqd"}> : () -> ()
    %cst_23 = arith.constant dense<0.000000e+00> : vector<1x16x8xf32>
    %76 = tpu.matmul %74, %75, %cst_23 {dimension_numbers = #tpu.dot_dimension_numbers<[2], [1], [1], [2], [0, 0, 0, 1, 1, 2], [0], [0]>} : vector<1x16x16xbf16>, vector<1x16x8xbf16>, vector<1x16x8xf32> -> vector<1x16x8xf32>
    "tpu.trace_stop"() : () -> ()
    %77 = vector.extract_strided_slice %15 {offsets = [0, 0, 24], sizes = [1, 16, 8], strides = [1, 1, 1]} : vector<1x16x32xbf16> to vector<1x16x8xbf16>
    %78 = vector.extract_strided_slice %18 {offsets = [0, 0, 24], sizes = [1, 16, 8], strides = [1, 1, 1]} : vector<1x16x32xbf16> to vector<1x16x8xbf16>
    "tpu.trace_start"() <{level = 10 : i32, message = "bqd,bkd->bqk"}> : () -> ()
    %cst_24 = arith.constant dense<0.000000e+00> : vector<1x16x16xf32>
    %79 = tpu.matmul %77, %78, %cst_24 {dimension_numbers = #tpu.dot_dimension_numbers<[2], [2], [1], [1], [0, 0, 0, 1, 1, 1], [0], [0]>} : vector<1x16x8xbf16>, vector<1x16x8xbf16>, vector<1x16x16xf32> -> vector<1x16x16xf32>
    "tpu.trace_stop"() : () -> ()
    %80 = vector.broadcast %22 : vector<1x1x16xf32> to vector<1x16x16xf32>
    %81 = arith.addf %79, %80 : vector<1x16x16xf32>
    %cst_25 = arith.constant dense<0xFF800000> : vector<1x16xf32>
    %82 = vector.multi_reduction <maximumf>, %81, %cst_25 [2] : vector<1x16x16xf32> to vector<1x16xf32>
    %83 = vector.shape_cast %82 : vector<1x16xf32> to vector<1x16x1xf32>
    %84 = vector.broadcast %83 : vector<1x16x1xf32> to vector<1x16x16xf32>
    %85 = arith.subf %81, %84 : vector<1x16x16xf32>
    %86 = math.exp %85 : vector<1x16x16xf32>
    %cst_26 = arith.constant dense<0.000000e+00> : vector<1x16xf32>
    %87 = vector.multi_reduction <add>, %86, %cst_26 [2] : vector<1x16x16xf32> to vector<1x16xf32>
    %88 = vector.shape_cast %87 : vector<1x16xf32> to vector<1x16x1xf32>
    %89 = tpu.reciprocal %88 {approx = true} : vector<1x16x1xf32> -> vector<1x16x1xf32>
    %90 = vector.broadcast %89 : vector<1x16x1xf32> to vector<1x16x16xf32>
    %91 = arith.mulf %86, %90 : vector<1x16x16xf32>
    %92 = arith.truncf %91 : vector<1x16x16xf32> to vector<1x16x16xbf16>
    %93 = vector.extract_strided_slice %21 {offsets = [0, 0, 24], sizes = [1, 16, 8], strides = [1, 1, 1]} : vector<1x16x32xbf16> to vector<1x16x8xbf16>
    "tpu.trace_start"() <{level = 10 : i32, message = "bqk,bkd->bqd"}> : () -> ()
    %cst_27 = arith.constant dense<0.000000e+00> : vector<1x16x8xf32>
    %94 = tpu.matmul %92, %93, %cst_27 {dimension_numbers = #tpu.dot_dimension_numbers<[2], [1], [1], [2], [0, 0, 0, 1, 1, 2], [0], [0]>} : vector<1x16x16xbf16>, vector<1x16x8xbf16>, vector<1x16x8xf32> -> vector<1x16x8xf32>
    "tpu.trace_stop"() : () -> ()
    %95 = tpu.concatenate %40, %58, %76, %94 in 2 : vector<1x16x8xf32>, vector<1x16x8xf32>, vector<1x16x8xf32>, vector<1x16x8xf32> -> vector<1x16x32xf32>
    %96 = vector.shape_cast %95 : vector<1x16x32xf32> to vector<16x32xf32>
    %97 = arith.truncf %96 : vector<16x32xf32> to vector<16x32xbf16>
    %c0_28 = arith.constant 0 : index
    %c0_29 = arith.constant 0 : index
    %c0_30 = arith.constant 0 : index
    %98 = vector.load %arg6[%c0_28, %c0_29, %c0_30] : memref<1x32x32xbf16, #tpu.memory_space<vmem>>, vector<1x32x32xbf16>
    %99 = vector.shape_cast %98 : vector<1x32x32xbf16> to vector<32x32xbf16>
    %cst_31 = arith.constant dense<0.000000e+00> : vector<16x32xf32>
    %100 = tpu.matmul %97, %99, %cst_31 {dimension_numbers = #tpu.dot_dimension_numbers<[1], [0], [0], [1], [0, 0, 1, 1], [], []>} : vector<16x32xbf16>, vector<32x32xbf16>, vector<16x32xf32> -> vector<16x32xf32>
    %c0_32 = arith.constant 0 : index
    %c0_33 = arith.constant 0 : index
    %c0_34 = arith.constant 0 : index
    %101 = vector.load %arg7[%c0_32, %c0_33, %c0_34] : memref<1x1x32xf32, #tpu.memory_space<vmem>>, vector<1x1x32xf32>
    %102 = vector.shape_cast %101 : vector<1x1x32xf32> to vector<1x32xf32>
    %103 = vector.broadcast %102 : vector<1x32xf32> to vector<16x32xf32>
    %104 = arith.addf %100, %103 : vector<16x32xf32>
    %105 = arith.addf %4, %104 : vector<16x32xf32>
    %c0_35 = arith.constant 0 : index
    %c0_36 = arith.constant 0 : index
    %c0_37 = arith.constant 0 : index
    %106 = vector.load %arg8[%c0_35, %c0_36, %c0_37] : memref<1x1x32xf32, #tpu.memory_space<vmem>>, vector<1x1x32xf32>
    %107 = vector.shape_cast %106 : vector<1x1x32xf32> to vector<1x32xf32>
    %c0_38 = arith.constant 0 : index
    %c0_39 = arith.constant 0 : index
    %c0_40 = arith.constant 0 : index
    %108 = vector.load %arg9[%c0_38, %c0_39, %c0_40] : memref<1x1x32xf32, #tpu.memory_space<vmem>>, vector<1x1x32xf32>
    %109 = vector.shape_cast %108 : vector<1x1x32xf32> to vector<1x32xf32>
    %cst_41 = arith.constant dense<0.000000e+00> : vector<16xf32>
    %110 = vector.multi_reduction <add>, %105, %cst_41 [1] : vector<16x32xf32> to vector<16xf32>
    %111 = vector.shape_cast %110 : vector<16xf32> to vector<16x1xf32>
    %cst_42 = arith.constant 3.200000e+01 : f32
    %112 = vector.broadcast %cst_42 : f32 to vector<16x1xf32>
    %113 = arith.divf %111, %112 : vector<16x1xf32>
    %114 = vector.broadcast %113 : vector<16x1xf32> to vector<16x32xf32>
    %115 = arith.subf %105, %114 : vector<16x32xf32>
    %116 = arith.mulf %115, %115 : vector<16x32xf32>
    %cst_43 = arith.constant dense<0.000000e+00> : vector<16xf32>
    %117 = vector.multi_reduction <add>, %116, %cst_43 [1] : vector<16x32xf32> to vector<16xf32>
    %118 = vector.shape_cast %117 : vector<16xf32> to vector<16x1xf32>
    %cst_44 = arith.constant 3.200000e+01 : f32
    %119 = vector.broadcast %cst_44 : f32 to vector<16x1xf32>
    %120 = arith.divf %118, %119 : vector<16x1xf32>
    %121 = vector.broadcast %113 : vector<16x1xf32> to vector<16x32xf32>
    %122 = arith.subf %105, %121 : vector<16x32xf32>
    %cst_45 = arith.constant 9.99999974E-6 : f32
    %123 = vector.broadcast %cst_45 : f32 to vector<16x1xf32>
    %124 = arith.addf %120, %123 : vector<16x1xf32>
    %125 = math.rsqrt %124 : vector<16x1xf32>
    %126 = vector.broadcast %125 : vector<16x1xf32> to vector<16x32xf32>
    %127 = arith.mulf %122, %126 : vector<16x32xf32>
    %128 = vector.broadcast %107 : vector<1x32xf32> to vector<16x32xf32>
    %129 = arith.mulf %127, %128 : vector<16x32xf32>
    %130 = vector.broadcast %109 : vector<1x32xf32> to vector<16x32xf32>
    %131 = arith.addf %129, %130 : vector<16x32xf32>
    %132 = arith.truncf %131 : vector<16x32xf32> to vector<16x32xbf16>
    %c0_46 = arith.constant 0 : index
    %c0_47 = arith.constant 0 : index
    %c0_48 = arith.constant 0 : index
    %133 = vector.load %arg10[%c0_46, %c0_47, %c0_48] : memref<1x32x32xbf16, #tpu.memory_space<vmem>>, vector<1x32x32xbf16>
    %134 = vector.shape_cast %133 : vector<1x32x32xbf16> to vector<32x32xbf16>
    %cst_49 = arith.constant dense<0.000000e+00> : vector<16x32xf32>
    %135 = tpu.matmul %132, %134, %cst_49 {dimension_numbers = #tpu.dot_dimension_numbers<[1], [0], [0], [1], [0, 0, 1, 1], [], []>} : vector<16x32xbf16>, vector<32x32xbf16>, vector<16x32xf32> -> vector<16x32xf32>
    %c0_50 = arith.constant 0 : index
    %c0_51 = arith.constant 0 : index
    %c0_52 = arith.constant 0 : index
    %136 = vector.load %arg11[%c0_50, %c0_51, %c0_52] : memref<1x1x32xf32, #tpu.memory_space<vmem>>, vector<1x1x32xf32>
    %137 = vector.shape_cast %136 : vector<1x1x32xf32> to vector<1x32xf32>
    %138 = vector.broadcast %137 : vector<1x32xf32> to vector<16x32xf32>
    %139 = arith.addf %135, %138 : vector<16x32xf32>
    %cst_53 = arith.constant 5.000000e-01 : f32
    %140 = vector.broadcast %cst_53 : f32 to vector<16x32xf32>
    %141 = arith.mulf %140, %139 : vector<16x32xf32>
    %cst_54 = arith.constant 0.707106769 : f32
    %142 = vector.broadcast %cst_54 : f32 to vector<16x32xf32>
    %143 = arith.mulf %139, %142 : vector<16x32xf32>
    %cst_55 = arith.constant 0.000000e+00 : f32
    %144 = vector.broadcast %cst_55 : f32 to vector<16x32xf32>
    %145 = arith.cmpf oge, %143, %144 : vector<16x32xf32>
    %cst_56 = arith.constant 1.000000e+00 : f32
    %cst_57 = arith.constant -1.000000e+00 : f32
    %146 = vector.broadcast %cst_56 : f32 to vector<16x32xf32>
    %147 = vector.broadcast %cst_57 : f32 to vector<16x32xf32>
    %148 = arith.select %145, %146, %147 : vector<16x32xi1>, vector<16x32xf32>
    %149 = math.absf %143 : vector<16x32xf32>
    %cst_58 = arith.constant 0.327591091 : f32
    %150 = vector.broadcast %cst_58 : f32 to vector<16x32xf32>
    %151 = arith.mulf %150, %149 : vector<16x32xf32>
    %cst_59 = arith.constant 1.000000e+00 : f32
    %152 = vector.broadcast %cst_59 : f32 to vector<16x32xf32>
    %153 = arith.addf %152, %151 : vector<16x32xf32>
    %154 = tpu.reciprocal %153 {approx = true} : vector<16x32xf32> -> vector<16x32xf32>
    %cst_60 = arith.constant 1.06140542 : f32
    %155 = vector.broadcast %cst_60 : f32 to vector<16x32xf32>
    %156 = arith.mulf %155, %154 : vector<16x32xf32>
    %cst_61 = arith.constant -1.45315206 : f32
    %157 = vector.broadcast %cst_61 : f32 to vector<16x32xf32>
    %158 = arith.addf %156, %157 : vector<16x32xf32>
    %159 = arith.mulf %158, %154 : vector<16x32xf32>
    %cst_62 = arith.constant 1.42141378 : f32
    %160 = vector.broadcast %cst_62 : f32 to vector<16x32xf32>
    %161 = arith.addf %159, %160 : vector<16x32xf32>
    %162 = arith.mulf %161, %154 : vector<16x32xf32>
    %cst_63 = arith.constant -0.284496725 : f32
    %163 = vector.broadcast %cst_63 : f32 to vector<16x32xf32>
    %164 = arith.addf %162, %163 : vector<16x32xf32>
    %165 = arith.mulf %164, %154 : vector<16x32xf32>
    %cst_64 = arith.constant 0.254829586 : f32
    %166 = vector.broadcast %cst_64 : f32 to vector<16x32xf32>
    %167 = arith.addf %165, %166 : vector<16x32xf32>
    %168 = arith.mulf %167, %154 : vector<16x32xf32>
    %cst_65 = arith.constant 0.000000e+00 : f32
    %169 = vector.broadcast %cst_65 : f32 to vector<16x32xf32>
    %170 = arith.subf %169, %149 : vector<16x32xf32>
    %171 = arith.mulf %170, %149 : vector<16x32xf32>
    %172 = math.exp %171 : vector<16x32xf32>
    %173 = arith.mulf %168, %172 : vector<16x32xf32>
    %cst_66 = arith.constant 1.000000e+00 : f32
    %174 = vector.broadcast %cst_66 : f32 to vector<16x32xf32>
    %175 = arith.subf %174, %173 : vector<16x32xf32>
    %176 = arith.mulf %148, %175 : vector<16x32xf32>
    %cst_67 = arith.constant 1.000000e+00 : f32
    %177 = vector.broadcast %cst_67 : f32 to vector<16x32xf32>
    %178 = arith.addf %177, %176 : vector<16x32xf32>
    %179 = arith.mulf %141, %178 : vector<16x32xf32>
    %180 = arith.truncf %179 : vector<16x32xf32> to vector<16x32xbf16>
    %c0_68 = arith.constant 0 : index
    %c0_69 = arith.constant 0 : index
    %c0_70 = arith.constant 0 : index
    %181 = vector.load %arg12[%c0_68, %c0_69, %c0_70] : memref<1x32x32xbf16, #tpu.memory_space<vmem>>, vector<1x32x32xbf16>
    %182 = vector.shape_cast %181 : vector<1x32x32xbf16> to vector<32x32xbf16>
    %cst_71 = arith.constant dense<0.000000e+00> : vector<16x32xf32>
    %183 = tpu.matmul %180, %182, %cst_71 {dimension_numbers = #tpu.dot_dimension_numbers<[1], [0], [0], [1], [0, 0, 1, 1], [], []>} : vector<16x32xbf16>, vector<32x32xbf16>, vector<16x32xf32> -> vector<16x32xf32>
    %c0_72 = arith.constant 0 : index
    %c0_73 = arith.constant 0 : index
    %c0_74 = arith.constant 0 : index
    %184 = vector.load %arg13[%c0_72, %c0_73, %c0_74] : memref<1x1x32xf32, #tpu.memory_space<vmem>>, vector<1x1x32xf32>
    %185 = vector.shape_cast %184 : vector<1x1x32xf32> to vector<1x32xf32>
    %186 = vector.broadcast %185 : vector<1x32xf32> to vector<16x32xf32>
    %187 = arith.addf %183, %186 : vector<16x32xf32>
    %188 = arith.addf %131, %187 : vector<16x32xf32>
    %c0_75 = arith.constant 0 : index
    %c0_76 = arith.constant 0 : index
    %c0_77 = arith.constant 0 : index
    %189 = vector.load %arg14[%c0_75, %c0_76, %c0_77] : memref<1x1x32xf32, #tpu.memory_space<vmem>>, vector<1x1x32xf32>
    %190 = vector.shape_cast %189 : vector<1x1x32xf32> to vector<1x32xf32>
    %c0_78 = arith.constant 0 : index
    %c0_79 = arith.constant 0 : index
    %c0_80 = arith.constant 0 : index
    %191 = vector.load %arg15[%c0_78, %c0_79, %c0_80] : memref<1x1x32xf32, #tpu.memory_space<vmem>>, vector<1x1x32xf32>
    %192 = vector.shape_cast %191 : vector<1x1x32xf32> to vector<1x32xf32>
    %cst_81 = arith.constant dense<0.000000e+00> : vector<16xf32>
    %193 = vector.multi_reduction <add>, %188, %cst_81 [1] : vector<16x32xf32> to vector<16xf32>
    %194 = vector.shape_cast %193 : vector<16xf32> to vector<16x1xf32>
    %cst_82 = arith.constant 3.200000e+01 : f32
    %195 = vector.broadcast %cst_82 : f32 to vector<16x1xf32>
    %196 = arith.divf %194, %195 : vector<16x1xf32>
    %197 = vector.broadcast %196 : vector<16x1xf32> to vector<16x32xf32>
    %198 = arith.subf %188, %197 : vector<16x32xf32>
    %199 = arith.mulf %198, %198 : vector<16x32xf32>
    %cst_83 = arith.constant dense<0.000000e+00> : vector<16xf32>
    %200 = vector.multi_reduction <add>, %199, %cst_83 [1] : vector<16x32xf32> to vector<16xf32>
    %201 = vector.shape_cast %200 : vector<16xf32> to vector<16x1xf32>
    %cst_84 = arith.constant 3.200000e+01 : f32
    %202 = vector.broadcast %cst_84 : f32 to vector<16x1xf32>
    %203 = arith.divf %201, %202 : vector<16x1xf32>
    %204 = vector.broadcast %196 : vector<16x1xf32> to vector<16x32xf32>
    %205 = arith.subf %188, %204 : vector<16x32xf32>
    %cst_85 = arith.constant 9.99999974E-6 : f32
    %206 = vector.broadcast %cst_85 : f32 to vector<16x1xf32>
    %207 = arith.addf %203, %206 : vector<16x1xf32>
    %208 = math.rsqrt %207 : vector<16x1xf32>
    %209 = vector.broadcast %208 : vector<16x1xf32> to vector<16x32xf32>
    %210 = arith.mulf %205, %209 : vector<16x32xf32>
    %211 = vector.broadcast %190 : vector<1x32xf32> to vector<16x32xf32>
    %212 = arith.mulf %210, %211 : vector<16x32xf32>
    %213 = vector.broadcast %192 : vector<1x32xf32> to vector<16x32xf32>
    %214 = arith.addf %212, %213 : vector<16x32xf32>
    %215 = vector.shape_cast %214 : vector<16x32xf32> to vector<1x16x32xf32>
    %c0_86 = arith.constant 0 : index
    %c0_87 = arith.constant 0 : index
    %c0_88 = arith.constant 0 : index
    %216 = vector.load %arg19[%c0_86, %c0_87, %c0_88] : memref<1x16x32xf32, #tpu.memory_space<vmem>>, vector<1x16x32xf32>
    tpu.vector_store %arg19[%c0_86, %c0_87, %c0_88], %215 {strides = array<i32>} : memref<1x16x32xf32, #tpu.memory_space<vmem>>, vector<1x16x32xf32>,
    %c1_i32 = arith.constant 1 : i32
    %217 = arith.cmpi eq, %arg1, %c1_i32 : i32
    %218 = arith.extui %217 : i1 to i32
    %c0_i32_89 = arith.constant 0 : i32
    %219 = arith.cmpi ne, %218, %c0_i32_89 : i32
    scf.if %219 {
      %c0_90 = arith.constant 0 : index
      %c0_91 = arith.constant 0 : index
      %220 = vector.load %arg16[%c0_90, %c0_91] : memref<1x32xf32, #tpu.memory_space<vmem>>, vector<1x32xf32>
      %c0_92 = arith.constant 0 : index
      %c0_93 = arith.constant 0 : index
      %221 = vector.load %arg17[%c0_92, %c0_93] : memref<1x32xf32, #tpu.memory_space<vmem>>, vector<1x32xf32>
      %cst_94 = arith.constant dense<0.000000e+00> : vector<16xf32>
      %222 = vector.multi_reduction <add>, %214, %cst_94 [1] : vector<16x32xf32> to vector<16xf32>
      %223 = vector.shape_cast %222 : vector<16xf32> to vector<16x1xf32>
      %cst_95 = arith.constant 3.200000e+01 : f32
      %224 = vector.broadcast %cst_95 : f32 to vector<16x1xf32>
      %225 = arith.divf %223, %224 : vector<16x1xf32>
      %226 = vector.broadcast %225 : vector<16x1xf32> to vector<16x32xf32>
      %227 = arith.subf %214, %226 : vector<16x32xf32>
      %228 = arith.mulf %227, %227 : vector<16x32xf32>
      %cst_96 = arith.constant dense<0.000000e+00> : vector<16xf32>
      %229 = vector.multi_reduction <add>, %228, %cst_96 [1] : vector<16x32xf32> to vector<16xf32>
      %230 = vector.shape_cast %229 : vector<16xf32> to vector<16x1xf32>
      %cst_97 = arith.constant 3.200000e+01 : f32
      %231 = vector.broadcast %cst_97 : f32 to vector<16x1xf32>
      %232 = arith.divf %230, %231 : vector<16x1xf32>
      %233 = vector.broadcast %225 : vector<16x1xf32> to vector<16x32xf32>
      %234 = arith.subf %214, %233 : vector<16x32xf32>
      %cst_98 = arith.constant 9.99999974E-6 : f32
      %235 = vector.broadcast %cst_98 : f32 to vector<16x1xf32>
      %236 = arith.addf %232, %235 : vector<16x1xf32>
      %237 = math.rsqrt %236 : vector<16x1xf32>
      %238 = vector.broadcast %237 : vector<16x1xf32> to vector<16x32xf32>
      %239 = arith.mulf %234, %238 : vector<16x32xf32>
      %240 = vector.broadcast %220 : vector<1x32xf32> to vector<16x32xf32>
      %241 = arith.mulf %239, %240 : vector<16x32xf32>
      %242 = vector.broadcast %221 : vector<1x32xf32> to vector<16x32xf32>
      %243 = arith.addf %241, %242 : vector<16x32xf32>
      %244 = vector.shape_cast %243 : vector<16x32xf32> to vector<1x16x32xf32>
      %245 = tpu.iota {dimensions = array<i32: 1>} : vector<1x16x1xi32>
      %c9_i32 = arith.constant 9 : i32
      %246 = vector.broadcast %c9_i32 : i32 to vector<1x16x1xi32>
      %247 = arith.cmpi slt, %245, %246 : vector<1x16x1xi32>
      %248 = arith.extui %247 : vector<1x16x1xi1> to vector<1x16x1xi32>
      %249 = arith.sitofp %248 : vector<1x16x1xi32> to vector<1x16x1xf32>
      %250 = vector.broadcast %249 : vector<1x16x1xf32> to vector<1x16x32xf32>
      %251 = arith.mulf %244, %250 : vector<1x16x32xf32>
      %cst_99 = arith.constant dense<0.000000e+00> : vector<1x32xf32>
      %252 = vector.multi_reduction <add>, %251, %cst_99 [1] : vector<1x16x32xf32> to vector<1x32xf32>
      %253 = vector.shape_cast %252 : vector<1x32xf32> to vector<1x1x32xf32>
      %cst_100 = arith.constant 0.111111112 : f32
      %254 = vector.broadcast %cst_100 : f32 to vector<1x1x32xf32>
      %255 = arith.mulf %253, %254 : vector<1x1x32xf32>
      %c0_101 = arith.constant 0 : index
      %c0_102 = arith.constant 0 : index
      %c0_103 = arith.constant 0 : index
      %256 = vector.load %arg18[%c0_101, %c0_102, %c0_103] : memref<1x1x32xf32, #tpu.memory_space<vmem>>, vector<1x1x32xf32>
      tpu.vector_store %arg18[%c0_101, %c0_102, %c0_103], %255 {strides = array<i32>} : memref<1x1x32xf32, #tpu.memory_space<vmem>>, vector<1x1x32xf32>,
    } else {
    }
    return
  }
  func.func @transform_0(%arg0: i32, %arg1: i32) -> (i32, i32, i32) {
    %c0_i32 = arith.constant 0 : i32
    %c0_i32_0 = arith.constant 0 : i32
    %c0_i32_1 = arith.constant 0 : i32
    return %arg0, %c0_i32, %c0_i32_0 : i32, i32, i32
  }
  func.func @transform_1(%arg0: i32, %arg1: i32) -> (i32, i32, i32) {
    %c0_i32 = arith.constant 0 : i32
    %c0_i32_0 = arith.constant 0 : i32
    %c0_i32_1 = arith.constant 0 : i32
    return %arg0, %c0_i32, %c0_i32_0 : i32, i32, i32
  }
  func.func @transform_2(%arg0: i32, %arg1: i32) -> (i32, i32, i32) {
    %c0_i32 = arith.constant 0 : i32
    %c0_i32_0 = arith.constant 0 : i32
    %c0_i32_1 = arith.constant 0 : i32
    return %arg1, %c0_i32, %c0_i32_0 : i32, i32, i32
  }
  func.func @transform_3(%arg0: i32, %arg1: i32) -> (i32, i32, i32) {
    %c0_i32 = arith.constant 0 : i32
    %c0_i32_0 = arith.constant 0 : i32
    %c0_i32_1 = arith.constant 0 : i32
    return %arg1, %c0_i32, %c0_i32_0 : i32, i32, i32
  }
  func.func @transform_4(%arg0: i32, %arg1: i32) -> (i32, i32, i32) {
    %c0_i32 = arith.constant 0 : i32
    %c0_i32_0 = arith.constant 0 : i32
    %c0_i32_1 = arith.constant 0 : i32
    return %arg1, %c0_i32, %c0_i32_0 : i32, i32, i32
  }
  func.func @transform_5(%arg0: i32, %arg1: i32) -> (i32, i32, i32) {
    %c0_i32 = arith.constant 0 : i32
    %c0_i32_0 = arith.constant 0 : i32
    %c0_i32_1 = arith.constant 0 : i32
    return %arg1, %c0_i32, %c0_i32_0 : i32, i32, i32
  }
  func.func @transform_6(%arg0: i32, %arg1: i32) -> (i32, i32, i32) {
    %c0_i32 = arith.constant 0 : i32
    %c0_i32_0 = arith.constant 0 : i32
    %c0_i32_1 = arith.constant 0 : i32
    return %arg1, %c0_i32, %c0_i32_0 : i32, i32, i32
  }
  func.func @transform_7(%arg0: i32, %arg1: i32) -> (i32, i32, i32) {
    %c0_i32 = arith.constant 0 : i32
    %c0_i32_0 = arith.constant 0 : i32
    %c0_i32_1 = arith.constant 0 : i32
    return %arg1, %c0_i32, %c0_i32_0 : i32, i32, i32
  }
  func.func @transform_8(%arg0: i32, %arg1: i32) -> (i32, i32, i32) {
    %c0_i32 = arith.constant 0 : i32
    %c0_i32_0 = arith.constant 0 : i32
    %c0_i32_1 = arith.constant 0 : i32
    return %arg1, %c0_i32, %c0_i32_0 : i32, i32, i32
  }
  func.func @transform_9(%arg0: i32, %arg1: i32) -> (i32, i32, i32) {
    %c0_i32 = arith.constant 0 : i32
    %c0_i32_0 = arith.constant 0 : i32
    %c0_i32_1 = arith.constant 0 : i32
    return %arg1, %c0_i32, %c0_i32_0 : i32, i32, i32
  }
  func.func @transform_10(%arg0: i32, %arg1: i32) -> (i32, i32, i32) {
    %c0_i32 = arith.constant 0 : i32
    %c0_i32_0 = arith.constant 0 : i32
    %c0_i32_1 = arith.constant 0 : i32
    return %arg1, %c0_i32, %c0_i32_0 : i32, i32, i32
  }
  func.func @transform_11(%arg0: i32, %arg1: i32) -> (i32, i32, i32) {
    %c0_i32 = arith.constant 0 : i32
    %c0_i32_0 = arith.constant 0 : i32
    %c0_i32_1 = arith.constant 0 : i32
    return %arg1, %c0_i32, %c0_i32_0 : i32, i32, i32
  }
  func.func @transform_12(%arg0: i32, %arg1: i32) -> (i32, i32, i32) {
    %c0_i32 = arith.constant 0 : i32
    %c0_i32_0 = arith.constant 0 : i32
    %c0_i32_1 = arith.constant 0 : i32
    return %arg1, %c0_i32, %c0_i32_0 : i32, i32, i32
  }
  func.func @transform_13(%arg0: i32, %arg1: i32) -> (i32, i32, i32) {
    %c0_i32 = arith.constant 0 : i32
    %c0_i32_0 = arith.constant 0 : i32
    %c0_i32_1 = arith.constant 0 : i32
    return %arg1, %c0_i32, %c0_i32_0 : i32, i32, i32
  }
  func.func @transform_14(%arg0: i32, %arg1: i32) -> (i32, i32) {
    %c0_i32 = arith.constant 0 : i32
    %c0_i32_0 = arith.constant 0 : i32
    %c0_i32_1 = arith.constant 0 : i32
    return %c0_i32, %c0_i32_0 : i32, i32
  }
  func.func @transform_15(%arg0: i32, %arg1: i32) -> (i32, i32) {
    %c0_i32 = arith.constant 0 : i32
    %c0_i32_0 = arith.constant 0 : i32
    %c0_i32_1 = arith.constant 0 : i32
    return %c0_i32, %c0_i32_0 : i32, i32
  }
  func.func @transform_16(%arg0: i32, %arg1: i32) -> (i32, i32, i32) {
    %c0_i32 = arith.constant 0 : i32
    %c0_i32_0 = arith.constant 0 : i32
    %c0_i32_1 = arith.constant 0 : i32
    return %arg0, %c0_i32, %c0_i32_0 : i32, i32, i32
  }
}

</mosaic_0001>

<llo_original>
// kernel: tpu_custom_call.1
$region0: #{tpu_custom_call.1}
  #allocation0 [shape = 'u32[]', space=smem, size = 0x4, offset = 0x4, fixed_abs, tag = 'smem constant byte address 0x4 - core index']
  #allocation1 [shape = 'u32[144,128]{1,0:T(1,128)}', space=vmem, size = 0x12000, scoped, tag = 'internal scratch']
  #allocation2 [shape = 'f32[1,16,32]{2,1,0:T(8,128)}', space=vmem, size = 0x2000, scoped, tag = 'scratch operand']
  %s0 = inlined_call_operand.hbm [shape: f32[2,16,32], index: 0, kind: input, shape index: {}]
  %s1 = inlined_call_operand.hbm [shape: f32[2,1,16], index: 1, kind: input, shape index: {}]
  %s2 = inlined_call_operand.hbm [shape: bf16[2,32,96], index: 2, kind: input, shape index: {}]
  %s3 = inlined_call_operand.hbm [shape: f32[2,1,96], index: 3, kind: input, shape index: {}]
  %s4 = inlined_call_operand.hbm [shape: bf16[2,32,32], index: 4, kind: input, shape index: {}]
  %s5 = inlined_call_operand.hbm [shape: f32[2,1,32], index: 5, kind: input, shape index: {}]
  %s6 = inlined_call_operand.hbm [shape: f32[2,1,32], index: 6, kind: input, shape index: {}]
  %s7 = inlined_call_operand.hbm [shape: f32[2,1,32], index: 7, kind: input, shape index: {}]
  %s8 = inlined_call_operand.hbm [shape: bf16[2,32,32], index: 8, kind: input, shape index: {}]
  %s9 = inlined_call_operand.hbm [shape: f32[2,1,32], index: 9, kind: input, shape index: {}]
  %s10 = inlined_call_operand.hbm [shape: bf16[2,32,32], index: 10, kind: input, shape index: {}]
  %s11 = inlined_call_operand.hbm [shape: f32[2,1,32], index: 11, kind: input, shape index: {}]
  %s12 = inlined_call_operand.hbm [shape: f32[2,1,32], index: 12, kind: input, shape index: {}]
  %s13 = inlined_call_operand.hbm [shape: f32[2,1,32], index: 13, kind: input, shape index: {}]
  %s14 = inlined_call_operand.hbm [shape: f32[1,32], index: 14, kind: input, shape index: {}]
  %s15 = inlined_call_operand.hbm [shape: f32[1,32], index: 15, kind: input, shape index: {}]
  %s16 = inlined_call_operand.hbm [shape: f32[2,1,32], index: 16, kind: output, shape index: {}]
  %s17 = sld [smem:[#allocation0]]
  $region169: #{tpu_custom_call.1} parent=0
    _
  %s19 = ssub.s32 1, %s17
  %s20 = scalar_select 0, %s19, %s17
  $region1: #{tpu_custom_call.1} parent=0
    #allocation3 [shape = 'u8[16384]{0}', space=vmem, size = 0x4000, scoped, tag = 'input window, operand 0']
    #allocation4 [shape = 's32[2]{0}', space=sflag, size = 0x8, scoped, tag = 'scoped memory for tpu_custom_call.1']
    #allocation5 [shape = 's32[2]{0}', space=sflag, size = 0x8, scoped, tag = 'scoped memory for tpu_custom_call.1']
    #allocation6 [shape = 'u8[1024]{0}', space=vmem, size = 0x400, scoped, tag = 'input window, operand 1']
    #allocation7 [shape = 's32[2]{0}', space=sflag, size = 0x8, scoped, tag = 'scoped memory for tpu_custom_call.1']
    #allocation8 [shape = 'u8[16384]{0}', space=vmem, size = 0x4000, scoped, tag = 'input window, operand 2']
    #allocation9 [shape = 'u8[1024]{0}', space=vmem, size = 0x400, scoped, tag = 'input window, operand 3']
    #allocation10 [shape = 's32[2]{0}', space=sflag, size = 0x8, scoped, tag = 'scoped memory for tpu_custom_call.1']
    #allocation11 [shape = 'u8[16384]{0}', space=vmem, size = 0x4000, scoped, tag = 'input window, operand 4']
    #allocation12 [shape = 'u8[1024]{0}', space=vmem, size = 0x400, scoped, tag = 'input window, operand 5']
    #allocation13 [shape = 's32[2]{0}', space=sflag, size = 0x8, scoped, tag = 'scoped memory for tpu_custom_call.1']
    #allocation14 [shape = 'u8[1024]{0}', space=vmem, size = 0x400, scoped, tag = 'input window, operand 6']
    #allocation15 [shape = 'u8[1024]{0}', space=vmem, size = 0x400, scoped, tag = 'input window, operand 7']
    #allocation16 [shape = 's32[2]{0}', space=sflag, size = 0x8, scoped, tag = 'scoped memory for tpu_custom_call.1']
    #allocation17 [shape = 'u8[16384]{0}', space=vmem, size = 0x4000, scoped, tag = 'input window, operand 8']
    #allocation18 [shape = 'u8[1024]{0}', space=vmem, size = 0x400, scoped, tag = 'input window, operand 9']
    #allocation19 [shape = 's32[2]{0}', space=sflag, size = 0x8, scoped, tag = 'scoped memory for tpu_custom_call.1']
    #allocation20 [shape = 'u8[16384]{0}', space=vmem, size = 0x4000, scoped, tag = 'input window, operand 10']
    #allocation21 [shape = 'u8[1024]{0}', space=vmem, size = 0x400, scoped, tag = 'input window, operand 11']
    #allocation22 [shape = 's32[2]{0}', space=sflag, size = 0x8, scoped, tag = 'scoped memory for tpu_custom_call.1']
    #allocation23 [shape = 'u8[1024]{0}', space=vmem, size = 0x400, scoped, tag = 'input window, operand 12']
    #allocation24 [shape = 'u8[1024]{0}', space=vmem, size = 0x400, scoped, tag = 'input window, operand 13']
    #allocation25 [shape = 's32[2]{0}', space=sflag, size = 0x8, scoped, tag = 'scoped memory for tpu_custom_call.1']
    #allocation26 [shape = 'u8[512]{0}', space=vmem, size = 0x400, scoped, tag = 'input window, operand 14, single buffered']
    #allocation27 [shape = 'u8[512]{0}', space=vmem, size = 0x400, scoped, tag = 'input window, operand 15, single buffered']
    #allocation28 [shape = 's32[1]{0}', space=sflag, size = 0x4, scoped, tag = 'scoped memory for tpu_custom_call.1']
    #allocation29 [shape = 'u8[1024]{0}', space=vmem, size = 0x400, scoped, tag = 'output window, operand 0']
    %21 = vsyncpa [#allocation4], 0
    %s22 = scalar_lea.sflag [#allocation4], 1
    %23 = vsyncpa %s22, 0
    %24 = vsyncpa [#allocation7], 0
    %s25 = scalar_lea.sflag [#allocation7], 1
    %26 = vsyncpa %s25, 0
    %27 = vsyncpa [#allocation10], 0
    %s28 = scalar_lea.sflag [#allocation10], 1
    %29 = vsyncpa %s28, 0
    %30 = vsyncpa [#allocation13], 0
    %s31 = scalar_lea.sflag [#allocation13], 1
    %32 = vsyncpa %s31, 0
    %33 = vsyncpa [#allocation16], 0
    %s34 = scalar_lea.sflag [#allocation16], 1
    %35 = vsyncpa %s34, 0
    %36 = vsyncpa [#allocation19], 0
    %s37 = scalar_lea.sflag [#allocation19], 1
    %38 = vsyncpa %s37, 0
    %39 = vsyncpa [#allocation22], 0
    %s40 = scalar_lea.sflag [#allocation22], 1
    %41 = vsyncpa %s40, 0
    %42 = vsyncpa [#allocation25], 0
    %s43 = scalar_lea.sflag [#allocation25], 1
    %44 = vsyncpa %s43, 0
    %45 = vsyncpa [#allocation28], 0
    %46 = vsyncpa [#allocation5], 0
    %s47 = scalar_lea.sflag [#allocation5], 1
    %48 = vsyncpa %s47, 0
    loop: start=0, step=1, limit=6
    $region2: #{tpu_custom_call.1} parent=1 // loop_pre_header
      _
    $region3: #{tpu_custom_call.1} parent=1 // loop_header
      %s50 = sphi 0, %s54
      %p51 = scmp.ge.s32.totalorder %s50, 6
      %s57 = sphi 0, %s69
      %s58 = sphi 0, %s65
      %s59 = sphi 0, %s57
      %s60 = sphi 0, %s58
      %s61 = sphi 0, %s59
      %s62 = sphi 0, %s60
      %s72 = sphi 0, %s74
      %s75 = sphi 0, %s72
      %s76 = sphi 0, %s75
      %s92 = sphi 0, %s76
      %s98 = sphi 0, %s100
      %s101 = sphi 0, %s98
      %s102 = sphi 0, %s101
      %s118 = sphi 0, %s102
      %s124 = sphi 0, %s126
      %s127 = sphi 0, %s124
      %s128 = sphi 0, %s127
      %s144 = sphi 0, %s128
      %s150 = sphi 0, %s152
      %s153 = sphi 0, %s150
      %s154 = sphi 0, %s153
      %s170 = sphi 0, %s154
      %s176 = sphi 0, %s178
      %s179 = sphi 0, %s176
      %s180 = sphi 0, %s179
      %s196 = sphi 0, %s180
      %s202 = sphi 0, %s204
      %s205 = sphi 0, %s202
      %s206 = sphi 0, %s205
      %s222 = sphi 0, %s206
      %s228 = sphi 0, %s230
      %s231 = sphi 0, %s228
      %s232 = sphi 0, %s231
      %s248 = sphi 0, %s232
      %s254 = sphi 0, %s256
      %s257 = sphi 0, %s254
      %s258 = sphi 0, %s257
      %s274 = sphi 0, %s258
      %s280 = sphi 0, %s282
      %s283 = sphi 0, %s280
      %s284 = sphi 0, %s283
      %s300 = sphi 0, %s284
      %s306 = sphi 0, %s308
      %s309 = sphi 0, %s306
      %s310 = sphi 0, %s309
      %s326 = sphi 0, %s310
      %s332 = sphi 0, %s334
      %s335 = sphi 0, %s332
      %s336 = sphi 0, %s335
      %s352 = sphi 0, %s336
      %s358 = sphi 0, %s360
      %s361 = sphi 0, %s358
      %s362 = sphi 0, %s361
      %s378 = sphi 0, %s362
      %s384 = sphi 0, %s386
      %s387 = sphi 0, %s384
      %s388 = sphi 0, %s387
      %s404 = sphi 0, %s388
      %s410 = sphi 0, %s412
      %s413 = sphi 0, %s410
      %s414 = sphi 0, %s413
      %s430 = sphi 0, %s414
      %s434 = sphi 0, %s434
      %s436 = sphi 0, %s434
      %s437 = sphi 0, %s436
      %s451 = sphi 0, %s437
      %s455 = sphi 0, %s455
      %s457 = sphi 0, %s455
      %s458 = sphi 0, %s457
      %s472 = sphi 0, %s458
      %s478 = sphi 0, %s480
      %s481 = sphi 0, %s478
      %s482 = sphi 0, %s481
      %s498 = sphi 0, %s482
    $region4: #{tpu_custom_call.1} parent=1 // loop_header_branch
      %53 = sbr.rel (%p51) target = $region8
    $region5: #{tpu_custom_call.1} parent=1 // loop_body
      %s55 = ssub.s32 %s50, 1
      %s56 = ssub.s32 %s50, 2
      %s63 = sadd.s32 1, %s58
      %p64 = scmp.ge.s32.totalorder %s63, 2
      %s65 = scalar_select %p64, 0, %s63
      %s66 = sadd.s32 1, %s57
      %s67 = scalar_select %p64, %s66, %s57
      %p68 = scmp.ge.s32.totalorder %s67, 2
      %s69 = scalar_select %p68, 0, %s67
      %s70 = ssub.s32 %s57, %s69
      %p71 = scmp.eq.s32.totalorder %s70, 0
      %s73 = sadd.s32 %s72, 1
      %s74 = scalar_select %p71, %s72, %s73
      %p77 = pneg %p71
      %p78 = scmp.eq.s32.totalorder %s50, 3
      %p79 = por %p77, %p78
      %p80 = scmp.ne.s32.totalorder %s72, %s75
      %p81 = scmp.eq.s32.totalorder %s50, 0
      %p82 = por %p80, %p81
      %p83 = scmp.ne.s32.totalorder %s72, %s75
      %p84 = scmp.eq.s32.totalorder %s55, 3
      %p85 = por %p83, %p84
      %p86 = scmp.ne.s32.totalorder %s75, %s76
      %p87 = scmp.eq.s32.totalorder %s55, 0
      %p88 = por %p86, %p87
      %p89 = scmp.ne.s32.totalorder %s75, %s76
      %p90 = scmp.eq.s32.totalorder %s56, 3
      %p91 = por %p89, %p90
      %p93 = scmp.ne.s32.totalorder %s76, %s92
      %p94 = scmp.eq.s32.totalorder %s56, 0
      %p95 = por %p93, %p94
      %s96 = ssub.s32 %s57, %s69
      %p97 = scmp.eq.s32.totalorder %s96, 0
      %s99 = sadd.s32 %s98, 1
      %s100 = scalar_select %p97, %s98, %s99
      %p103 = pneg %p97
      %p104 = scmp.eq.s32.totalorder %s50, 3
      %p105 = por %p103, %p104
      %p106 = scmp.ne.s32.totalorder %s98, %s101
      %p107 = scmp.eq.s32.totalorder %s50, 0
      %p108 = por %p106, %p107
      %p109 = scmp.ne.s32.totalorder %s98, %s101
      %p110 = scmp.eq.s32.totalorder %s55, 3
      %p111 = por %p109, %p110
      %p112 = scmp.ne.s32.totalorder %s101, %s102
      %p113 = scmp.eq.s32.totalorder %s55, 0
      %p114 = por %p112, %p113
      %p115 = scmp.ne.s32.totalorder %s101, %s102
      %p116 = scmp.eq.s32.totalorder %s56, 3
      %p117 = por %p115, %p116
      %p119 = scmp.ne.s32.totalorder %s102, %s118
      %p120 = scmp.eq.s32.totalorder %s56, 0
      %p121 = por %p119, %p120
      %s122 = ssub.s32 %s58, %s65
      %p123 = scmp.eq.s32.totalorder %s122, 0
      %s125 = sadd.s32 %s124, 1
      %s126 = scalar_select %p123, %s124, %s125
      %p129 = pneg %p123
      %p130 = scmp.eq.s32.totalorder %s50, 3
      %p131 = por %p129, %p130
      %p132 = scmp.ne.s32.totalorder %s124, %s127
      %p133 = scmp.eq.s32.totalorder %s50, 0
      %p134 = por %p132, %p133
      %p135 = scmp.ne.s32.totalorder %s124, %s127
      %p136 = scmp.eq.s32.totalorder %s55, 3
      %p137 = por %p135, %p136
      %p138 = scmp.ne.s32.totalorder %s127, %s128
      %p139 = scmp.eq.s32.totalorder %s55, 0
      %p140 = por %p138, %p139
      %p141 = scmp.ne.s32.totalorder %s127, %s128
      %p142 = scmp.eq.s32.totalorder %s56, 3
      %p143 = por %p141, %p142
      %p145 = scmp.ne.s32.totalorder %s128, %s144
      %p146 = scmp.eq.s32.totalorder %s56, 0
      %p147 = por %p145, %p146
      %s148 = ssub.s32 %s58, %s65
      %p149 = scmp.eq.s32.totalorder %s148, 0
      %s151 = sadd.s32 %s150, 1
      %s152 = scalar_select %p149, %s150, %s151
      %p155 = pneg %p149
      %p156 = scmp.eq.s32.totalorder %s50, 3
      %p157 = por %p155, %p156
      %p158 = scmp.ne.s32.totalorder %s150, %s153
      %p159 = scmp.eq.s32.totalorder %s50, 0
      %p160 = por %p158, %p159
      %p161 = scmp.ne.s32.totalorder %s150, %s153
      %p162 = scmp.eq.s32.totalorder %s55, 3
      %p163 = por %p161, %p162
      %p164 = scmp.ne.s32.totalorder %s153, %s154
      %p165 = scmp.eq.s32.totalorder %s55, 0
      %p166 = por %p164, %p165
      %p167 = scmp.ne.s32.totalorder %s153, %s154
      %p168 = scmp.eq.s32.totalorder %s56, 3
      %p169 = por %p167, %p168
      %p171 = scmp.ne.s32.totalorder %s154, %s170
      %p172 = scmp.eq.s32.totalorder %s56, 0
      %p173 = por %p171, %p172
      %s174 = ssub.s32 %s58, %s65
      %p175 = scmp.eq.s32.totalorder %s174, 0
      %s177 = sadd.s32 %s176, 1
      %s178 = scalar_select %p175, %s176, %s177
      %p181 = pneg %p175
      %p182 = scmp.eq.s32.totalorder %s50, 3
      %p183 = por %p181, %p182
      %p184 = scmp.ne.s32.totalorder %s176, %s179
      %p185 = scmp.eq.s32.totalorder %s50, 0
      %p186 = por %p184, %p185
      %p187 = scmp.ne.s32.totalorder %s176, %s179
      %p188 = scmp.eq.s32.totalorder %s55, 3
      %p189 = por %p187, %p188
      %p190 = scmp.ne.s32.totalorder %s179, %s180
      %p191 = scmp.eq.s32.totalorder %s55, 0
      %p192 = por %p190, %p191
      %p193 = scmp.ne.s32.totalorder %s179, %s180
      %p194 = scmp.eq.s32.totalorder %s56, 3
      %p195 = por %p193, %p194
      %p197 = scmp.ne.s32.totalorder %s180, %s196
      %p198 = scmp.eq.s32.totalorder %s56, 0
      %p199 = por %p197, %p198
      %s200 = ssub.s32 %s58, %s65
      %p201 = scmp.eq.s32.totalorder %s200, 0
      %s203 = sadd.s32 %s202, 1
      %s204 = scalar_select %p201, %s202, %s203
      %p207 = pneg %p201
      %p208 = scmp.eq.s32.totalorder %s50, 3
      %p209 = por %p207, %p208
      %p210 = scmp.ne.s32.totalorder %s202, %s205
      %p211 = scmp.eq.s32.totalorder %s50, 0
      %p212 = por %p210, %p211
      %p213 = scmp.ne.s32.totalorder %s202, %s205
      %p214 = scmp.eq.s32.totalorder %s55, 3
      %p215 = por %p213, %p214
      %p216 = scmp.ne.s32.totalorder %s205, %s206
      %p217 = scmp.eq.s32.totalorder %s55, 0
      %p218 = por %p216, %p217
      %p219 = scmp.ne.s32.totalorder %s205, %s206
      %p220 = scmp.eq.s32.totalorder %s56, 3
      %p221 = por %p219, %p220
      %p223 = scmp.ne.s32.totalorder %s206, %s222
      %p224 = scmp.eq.s32.totalorder %s56, 0
      %p225 = por %p223, %p224
      %s226 = ssub.s32 %s58, %s65
      %p227 = scmp.eq.s32.totalorder %s226, 0
      %s229 = sadd.s32 %s228, 1
      %s230 = scalar_select %p227, %s228, %s229
      %p233 = pneg %p227
      %p234 = scmp.eq.s32.totalorder %s50, 3
      %p235 = por %p233, %p234
      %p236 = scmp.ne.s32.totalorder %s228, %s231
      %p237 = scmp.eq.s32.totalorder %s50, 0
      %p238 = por %p236, %p237
      %p239 = scmp.ne.s32.totalorder %s228, %s231
      %p240 = scmp.eq.s32.totalorder %s55, 3
      %p241 = por %p239, %p240
      %p242 = scmp.ne.s32.totalorder %s231, %s232
      %p243 = scmp.eq.s32.totalorder %s55, 0
      %p244 = por %p242, %p243
      %p245 = scmp.ne.s32.totalorder %s231, %s232
      %p246 = scmp.eq.s32.totalorder %s56, 3
      %p247 = por %p245, %p246
      %p249 = scmp.ne.s32.totalorder %s232, %s248
      %p250 = scmp.eq.s32.totalorder %s56, 0
      %p251 = por %p249, %p250
      %s252 = ssub.s32 %s58, %s65
      %p253 = scmp.eq.s32.totalorder %s252, 0
      %s255 = sadd.s32 %s254, 1
      %s256 = scalar_select %p253, %s254, %s255
      %p259 = pneg %p253
      %p260 = scmp.eq.s32.totalorder %s50, 3
      %p261 = por %p259, %p260
      %p262 = scmp.ne.s32.totalorder %s254, %s257
      %p263 = scmp.eq.s32.totalorder %s50, 0
      %p264 = por %p262, %p263
      %p265 = scmp.ne.s32.totalorder %s254, %s257
      %p266 = scmp.eq.s32.totalorder %s55, 3
      %p267 = por %p265, %p266
      %p268 = scmp.ne.s32.totalorder %s257, %s258
      %p269 = scmp.eq.s32.totalorder %s55, 0
      %p270 = por %p268, %p269
      %p271 = scmp.ne.s32.totalorder %s257, %s258
      %p272 = scmp.eq.s32.totalorder %s56, 3
      %p273 = por %p271, %p272
      %p275 = scmp.ne.s32.totalorder %s258, %s274
      %p276 = scmp.eq.s32.totalorder %s56, 0
      %p277 = por %p275, %p276
      %s278 = ssub.s32 %s58, %s65
      %p279 = scmp.eq.s32.totalorder %s278, 0
      %s281 = sadd.s32 %s280, 1
      %s282 = scalar_select %p279, %s280, %s281
      %p285 = pneg %p279
      %p286 = scmp.eq.s32.totalorder %s50, 3
      %p287 = por %p285, %p286
      %p288 = scmp.ne.s32.totalorder %s280, %s283
      %p289 = scmp.eq.s32.totalorder %s50, 0
      %p290 = por %p288, %p289
      %p291 = scmp.ne.s32.totalorder %s280, %s283
      %p292 = scmp.eq.s32.totalorder %s55, 3
      %p293 = por %p291, %p292
      %p294 = scmp.ne.s32.totalorder %s283, %s284
      %p295 = scmp.eq.s32.totalorder %s55, 0
      %p296 = por %p294, %p295
      %p297 = scmp.ne.s32.totalorder %s283, %s284
      %p298 = scmp.eq.s32.totalorder %s56, 3
      %p299 = por %p297, %p298
      %p301 = scmp.ne.s32.totalorder %s284, %s300
      %p302 = scmp.eq.s32.totalorder %s56, 0
      %p303 = por %p301, %p302
      %s304 = ssub.s32 %s58, %s65
      %p305 = scmp.eq.s32.totalorder %s304, 0
      %s307 = sadd.s32 %s306, 1
      %s308 = scalar_select %p305, %s306, %s307
      %p311 = pneg %p305
      %p312 = scmp.eq.s32.totalorder %s50, 3
      %p313 = por %p311, %p312
      %p314 = scmp.ne.s32.totalorder %s306, %s309
      %p315 = scmp.eq.s32.totalorder %s50, 0
      %p316 = por %p314, %p315
      %p317 = scmp.ne.s32.totalorder %s306, %s309
      %p318 = scmp.eq.s32.totalorder %s55, 3
      %p319 = por %p317, %p318
      %p320 = scmp.ne.s32.totalorder %s309, %s310
      %p321 = scmp.eq.s32.totalorder %s55, 0
      %p322 = por %p320, %p321
      %p323 = scmp.ne.s32.totalorder %s309, %s310
      %p324 = scmp.eq.s32.totalorder %s56, 3
      %p325 = por %p323, %p324
      %p327 = scmp.ne.s32.totalorder %s310, %s326
      %p328 = scmp.eq.s32.totalorder %s56, 0
      %p329 = por %p327, %p328
      %s330 = ssub.s32 %s58, %s65
      %p331 = scmp.eq.s32.totalorder %s330, 0
      %s333 = sadd.s32 %s332, 1
      %s334 = scalar_select %p331, %s332, %s333
      %p337 = pneg %p331
      %p338 = scmp.eq.s32.totalorder %s50, 3
      %p339 = por %p337, %p338
      %p340 = scmp.ne.s32.totalorder %s332, %s335
      %p341 = scmp.eq.s32.totalorder %s50, 0
      %p342 = por %p340, %p341
      %p343 = scmp.ne.s32.totalorder %s332, %s335
      %p344 = scmp.eq.s32.totalorder %s55, 3
      %p345 = por %p343, %p344
      %p346 = scmp.ne.s32.totalorder %s335, %s336
      %p347 = scmp.eq.s32.totalorder %s55, 0
      %p348 = por %p346, %p347
      %p349 = scmp.ne.s32.totalorder %s335, %s336
      %p350 = scmp.eq.s32.totalorder %s56, 3
      %p351 = por %p349, %p350
      %p353 = scmp.ne.s32.totalorder %s336, %s352
      %p354 = scmp.eq.s32.totalorder %s56, 0
      %p355 = por %p353, %p354
      %s356 = ssub.s32 %s58, %s65
      %p357 = scmp.eq.s32.totalorder %s356, 0
      %s359 = sadd.s32 %s358, 1
      %s360 = scalar_select %p357, %s358, %s359
      %p363 = pneg %p357
      %p364 = scmp.eq.s32.totalorder %s50, 3
      %p365 = por %p363, %p364
      %p366 = scmp.ne.s32.totalorder %s358, %s361
      %p367 = scmp.eq.s32.totalorder %s50, 0
      %p368 = por %p366, %p367
      %p369 = scmp.ne.s32.totalorder %s358, %s361
      %p370 = scmp.eq.s32.totalorder %s55, 3
      %p371 = por %p369, %p370
      %p372 = scmp.ne.s32.totalorder %s361, %s362
      %p373 = scmp.eq.s32.totalorder %s55, 0
      %p374 = por %p372, %p373
      %p375 = scmp.ne.s32.totalorder %s361, %s362
      %p376 = scmp.eq.s32.totalorder %s56, 3
      %p377 = por %p375, %p376
      %p379 = scmp.ne.s32.totalorder %s362, %s378
      %p380 = scmp.eq.s32.totalorder %s56, 0
      %p381 = por %p379, %p380
      %s382 = ssub.s32 %s58, %s65
      %p383 = scmp.eq.s32.totalorder %s382, 0
      %s385 = sadd.s32 %s384, 1
      %s386 = scalar_select %p383, %s384, %s385
      %p389 = pneg %p383
      %p390 = scmp.eq.s32.totalorder %s50, 3
      %p391 = por %p389, %p390
      %p392 = scmp.ne.s32.totalorder %s384, %s387
      %p393 = scmp.eq.s32.totalorder %s50, 0
      %p394 = por %p392, %p393
      %p395 = scmp.ne.s32.totalorder %s384, %s387
      %p396 = scmp.eq.s32.totalorder %s55, 3
      %p397 = por %p395, %p396
      %p398 = scmp.ne.s32.totalorder %s387, %s388
      %p399 = scmp.eq.s32.totalorder %s55, 0
      %p400 = por %p398, %p399
      %p401 = scmp.ne.s32.totalorder %s387, %s388
      %p402 = scmp.eq.s32.totalorder %s56, 3
      %p403 = por %p401, %p402
      %p405 = scmp.ne.s32.totalorder %s388, %s404
      %p406 = scmp.eq.s32.totalorder %s56, 0
      %p407 = por %p405, %p406
      %s408 = ssub.s32 %s58, %s65
      %p409 = scmp.eq.s32.totalorder %s408, 0
      %s411 = sadd.s32 %s410, 1
      %s412 = scalar_select %p409, %s410, %s411
      %p415 = pneg %p409
      %p416 = scmp.eq.s32.totalorder %s50, 3
      %p417 = por %p415, %p416
      %p418 = scmp.ne.s32.totalorder %s410, %s413
      %p419 = scmp.eq.s32.totalorder %s50, 0
      %p420 = por %p418, %p419
      %p421 = scmp.ne.s32.totalorder %s410, %s413
      %p422 = scmp.eq.s32.totalorder %s55, 3
      %p423 = por %p421, %p422
      %p424 = scmp.ne.s32.totalorder %s413, %s414
      %p425 = scmp.eq.s32.totalorder %s55, 0
      %p426 = por %p424, %p425
      %p427 = scmp.ne.s32.totalorder %s413, %s414
      %p428 = scmp.eq.s32.totalorder %s56, 3
      %p429 = por %p427, %p428
      %p431 = scmp.ne.s32.totalorder %s414, %s430
      %p432 = scmp.eq.s32.totalorder %s56, 0
      %p433 = por %p431, %p432
      %s435 = sadd.s32 %s434, 1
      %p438 = scmp.eq.s32.totalorder %s50, 3
      %p439 = scmp.ne.s32.totalorder %s434, %s436
      %p440 = scmp.eq.s32.totalorder %s50, 0
      %p441 = por %p439, %p440
      %p442 = scmp.ne.s32.totalorder %s434, %s436
      %p443 = scmp.eq.s32.totalorder %s55, 3
      %p444 = por %p442, %p443
      %p445 = scmp.ne.s32.totalorder %s436, %s437
      %p446 = scmp.eq.s32.totalorder %s55, 0
      %p447 = por %p445, %p446
      %p448 = scmp.ne.s32.totalorder %s436, %s437
      %p449 = scmp.eq.s32.totalorder %s56, 3
      %p450 = por %p448, %p449
      %p452 = scmp.ne.s32.totalorder %s437, %s451
      %p453 = scmp.eq.s32.totalorder %s56, 0
      %p454 = por %p452, %p453
      %s456 = sadd.s32 %s455, 1
      %p459 = scmp.eq.s32.totalorder %s50, 3
      %p460 = scmp.ne.s32.totalorder %s455, %s457
      %p461 = scmp.eq.s32.totalorder %s50, 0
      %p462 = por %p460, %p461
      %p463 = scmp.ne.s32.totalorder %s455, %s457
      %p464 = scmp.eq.s32.totalorder %s55, 3
      %p465 = por %p463, %p464
      %p466 = scmp.ne.s32.totalorder %s457, %s458
      %p467 = scmp.eq.s32.totalorder %s55, 0
      %p468 = por %p466, %p467
      %p469 = scmp.ne.s32.totalorder %s457, %s458
      %p470 = scmp.eq.s32.totalorder %s56, 3
      %p471 = por %p469, %p470
      %p473 = scmp.ne.s32.totalorder %s458, %s472
      %p474 = scmp.eq.s32.totalorder %s56, 0
      %p475 = por %p473, %p474
      %s476 = ssub.s32 %s57, %s69
      %p477 = scmp.eq.s32.totalorder %s476, 0
      %s479 = sadd.s32 %s478, 1
      %s480 = scalar_select %p477, %s478, %s479
      %p483 = pneg %p477
      %p484 = scmp.eq.s32.totalorder %s50, 3
      %p485 = por %p483, %p484
      %p486 = scmp.ne.s32.totalorder %s478, %s481
      %p487 = scmp.eq.s32.totalorder %s50, 0
      %p488 = por %p486, %p487
      %p489 = scmp.ne.s32.totalorder %s478, %s481
      %p490 = scmp.eq.s32.totalorder %s55, 3
      %p491 = por %p489, %p490
      %p492 = scmp.ne.s32.totalorder %s481, %s482
      %p493 = scmp.eq.s32.totalorder %s55, 0
      %p494 = por %p492, %p493
      %p495 = scmp.ne.s32.totalorder %s481, %s482
      %p496 = scmp.eq.s32.totalorder %s56, 3
      %p497 = por %p495, %p496
      %p499 = scmp.ne.s32.totalorder %s482, %s498
      %p500 = scmp.eq.s32.totalorder %s56, 0
      %p501 = por %p499, %p500
      %p502 = scmp.le.s32.totalorder 1, %s50
      %p503 = scmp.lt.s32.totalorder %s50, 5
      %p504 = pnand %p502, %p503
      %p505 = pneg %p504
      // Predicated region
      $region9: #{tpu_custom_call.1} parent=5 // pred_check
        _
      $region10: #{tpu_custom_call.1} parent=5 // pred_check_branch
        %507 = sbr.rel (%p504) target = $region12
      $region11: #{tpu_custom_call.1} parent=5 // pred_region
        %s508 = ssub.s32 %s50, 1
        // Predicated region
        $region13: #{tpu_custom_call.1} parent=11 // pred_check
          %p509 = pneg %p447
        $region14: #{tpu_custom_call.1} parent=11 // pred_check_branch
          %511 = sbr.rel (%p509) target = $region16
        $region15: #{tpu_custom_call.1} parent=11 // pred_region
          %s513 = ssub.s32 16, 16
          %514 = vsyncadd [#allocation25], %s513
          %s516 = sshll.u32 [#allocation26], 4
          %s517 = int_to_ptr.vmem [resolvable:$true] %s516
          %519 = dma.hbm_to_vmem [thread:$0]  %s14, 16, %s517, [#allocation25]
        $region16: #{tpu_custom_call.1} parent=11 // pred_fallthru
          _
        // Predicated region
        $region17: #{tpu_custom_call.1} parent=11 // pred_check
          %p520 = pneg %p468
        $region18: #{tpu_custom_call.1} parent=11 // pred_check_branch
          %522 = sbr.rel (%p520) target = $region20
        $region19: #{tpu_custom_call.1} parent=11 // pred_region
          %s524 = ssub.s32 16, 16
          %525 = vsyncadd [#allocation28], %s524
          %s527 = sshll.u32 [#allocation27], 4
          %s528 = int_to_ptr.vmem [resolvable:$true] %s527
          %530 = dma.hbm_to_vmem [thread:$0]  %s15, 16, %s528, [#allocation28]
        $region20: #{tpu_custom_call.1} parent=11 // pred_fallthru
          _
      $region12: #{tpu_custom_call.1} parent=5 // pred_fallthru
        _
      %p531 = scmp.lt.s32.totalorder %s50, 4
      // Predicated region
      $region21: #{tpu_custom_call.1} parent=5 // pred_check
        %p532 = pneg %p531
      $region22: #{tpu_custom_call.1} parent=5 // pred_check_branch
        %534 = sbr.rel (%p532) target = $region24
      $region23: #{tpu_custom_call.1} parent=5 // pred_region
        // Predicated region
        $region25: #{tpu_custom_call.1} parent=23 // pred_check
          %p535 = pneg %p82
        $region26: #{tpu_custom_call.1} parent=23 // pred_check_branch
          %537 = sbr.rel (%p535) target = $region28
        $region27: #{tpu_custom_call.1} parent=23 // pred_region
          %s538 = sand.u32 %s72, 1
          %s539 = scalar_lea.sflag [#allocation4], %s538
          %s540 = sand.u32 %s72, 1
          %s541 = smul.addr %s540, 16
          %s542 = scalar_lea.vmem [#allocation3], %s541
          %s544 = ssub.s32 256, 256
          %545 = vsyncadd %s539, %s544
          %s546 = smul.addr %s57, 2
          %s547 = smul.addr %s546, 128
          %s548 = scalar_lea.hbm %s0, %s547
          %s549 = sshll.u32 %s542, 4
          %s550 = int_to_ptr.vmem [resolvable:$true] %s549
          %555 = dma.hbm_to_vmem [thread:$0]  %s548, 256, %s550, %s539, 128, 128, 8
        $region28: #{tpu_custom_call.1} parent=23 // pred_fallthru
          _
        // Predicated region
        $region29: #{tpu_custom_call.1} parent=23 // pred_check
          %p556 = pneg %p108
        $region30: #{tpu_custom_call.1} parent=23 // pred_check_branch
          %558 = sbr.rel (%p556) target = $region32
        $region31: #{tpu_custom_call.1} parent=23 // pred_region
          %s559 = sand.u32 %s50, 1
          %s560 = scalar_lea.sflag [#allocation7], %s559
          %s561 = sand.u32 %s98, 1
          %s562 = scalar_lea.vmem [#allocation6], %s561
          %s564 = ssub.s32 16, 16
          %565 = vsyncadd %s560, %s564
          %s566 = smul.addr %s57, 16
          %s567 = scalar_lea.hbm %s1, %s566
          %s569 = sshll.u32 %s562, 4
          %s570 = int_to_ptr.vmem [resolvable:$true] %s569
          %572 = dma.hbm_to_vmem [thread:$0]  %s567, 16, %s570, %s560
        $region32: #{tpu_custom_call.1} parent=23 // pred_fallthru
          _
        // Predicated region
        $region33: #{tpu_custom_call.1} parent=23 // pred_check
          %p573 = pneg %p134
        $region34: #{tpu_custom_call.1} parent=23 // pred_check_branch
          %575 = sbr.rel (%p573) target = $region36
        $region35: #{tpu_custom_call.1} parent=23 // pred_region
          %s576 = sand.u32 %s50, 1
          %s577 = scalar_lea.sflag [#allocation7], %s576
          %s578 = sand.u32 %s124, 1
          %s579 = smul.addr %s578, 16
          %s580 = scalar_lea.vmem [#allocation8], %s579
          %s582 = ssub.s32 256, 256
          %583 = vsyncadd %s577, %s582
          %s584 = smul.addr %s58, 4
          %s585 = smul.addr %s584, 64
          %s586 = scalar_lea.hbm %s2, %s585
          %s587 = sshll.u32 %s580, 4
          %s588 = int_to_ptr.vmem [resolvable:$true] %s587
          %593 = dma.hbm_to_vmem [thread:$0]  %s586, 256, %s588, %s577, 64, 64, 4
        $region36: #{tpu_custom_call.1} parent=23 // pred_fallthru
          _
        // Predicated region
        $region37: #{tpu_custom_call.1} parent=23 // pred_check
          %p594 = pneg %p160
        $region38: #{tpu_custom_call.1} parent=23 // pred_check_branch
          %596 = sbr.rel (%p594) target = $region40
        $region39: #{tpu_custom_call.1} parent=23 // pred_region
          %s597 = sand.u32 %s50, 1
          %s598 = scalar_lea.sflag [#allocation10], %s597
          %s599 = sand.u32 %s150, 1
          %s600 = scalar_lea.vmem [#allocation9], %s599
          %s602 = ssub.s32 16, 16
          %603 = vsyncadd %s598, %s602
          %s604 = smul.addr %s58, 16
          %s605 = scalar_lea.hbm %s3, %s604
          %s607 = sshll.u32 %s600, 4
          %s608 = int_to_ptr.vmem [resolvable:$true] %s607
          %610 = dma.hbm_to_vmem [thread:$0]  %s605, 16, %s608, %s598
        $region40: #{tpu_custom_call.1} parent=23 // pred_fallthru
          _
        // Predicated region
        $region41: #{tpu_custom_call.1} parent=23 // pred_check
          %p611 = pneg %p186
        $region42: #{tpu_custom_call.1} parent=23 // pred_check_branch
          %613 = sbr.rel (%p611) target = $region44
        $region43: #{tpu_custom_call.1} parent=23 // pred_region
          %s614 = sand.u32 %s50, 1
          %s615 = scalar_lea.sflag [#allocation10], %s614
          %s616 = sand.u32 %s176, 1
          %s617 = smul.addr %s616, 16
          %s618 = scalar_lea.vmem [#allocation11], %s617
          %s620 = ssub.s32 256, 256
          %621 = vsyncadd %s615, %s620
          %s622 = smul.addr %s58, 4
          %s623 = smul.addr %s622, 64
          %s624 = scalar_lea.hbm %s4, %s623
          %s625 = sshll.u32 %s618, 4
          %s626 = int_to_ptr.vmem [resolvable:$true] %s625
          %631 = dma.hbm_to_vmem [thread:$0]  %s624, 256, %s626, %s615, 64, 64, 4
        $region44: #{tpu_custom_call.1} parent=23 // pred_fallthru
          _
        // Predicated region
        $region45: #{tpu_custom_call.1} parent=23 // pred_check
          %p632 = pneg %p212
        $region46: #{tpu_custom_call.1} parent=23 // pred_check_branch
          %634 = sbr.rel (%p632) target = $region48
        $region47: #{tpu_custom_call.1} parent=23 // pred_region
          %s635 = sand.u32 %s50, 1
          %s636 = scalar_lea.sflag [#allocation13], %s635
          %s637 = sand.u32 %s202, 1
          %s638 = scalar_lea.vmem [#allocation12], %s637
          %s640 = ssub.s32 16, 16
          %641 = vsyncadd %s636, %s640
          %s642 = smul.addr %s58, 16
          %s643 = scalar_lea.hbm %s5, %s642
          %s645 = sshll.u32 %s638, 4
          %s646 = int_to_ptr.vmem [resolvable:$true] %s645
          %648 = dma.hbm_to_vmem [thread:$0]  %s643, 16, %s646, %s636
        $region48: #{tpu_custom_call.1} parent=23 // pred_fallthru
          _
        // Predicated region
        $region49: #{tpu_custom_call.1} parent=23 // pred_check
          %p649 = pneg %p238
        $region50: #{tpu_custom_call.1} parent=23 // pred_check_branch
          %651 = sbr.rel (%p649) target = $region52
        $region51: #{tpu_custom_call.1} parent=23 // pred_region
          %s652 = sand.u32 %s50, 1
          %s653 = scalar_lea.sflag [#allocation13], %s652
          %s654 = sand.u32 %s228, 1
          %s655 = scalar_lea.vmem [#allocation14], %s654
          %s657 = ssub.s32 16, 16
          %658 = vsyncadd %s653, %s657
          %s659 = smul.addr %s58, 16
          %s660 = scalar_lea.hbm %s6, %s659
          %s662 = sshll.u32 %s655, 4
          %s663 = int_to_ptr.vmem [resolvable:$true] %s662
          %665 = dma.hbm_to_vmem [thread:$0]  %s660, 16, %s663, %s653
        $region52: #{tpu_custom_call.1} parent=23 // pred_fallthru
          _
        // Predicated region
        $region53: #{tpu_custom_call.1} parent=23 // pred_check
          %p666 = pneg %p264
        $region54: #{tpu_custom_call.1} parent=23 // pred_check_branch
          %668 = sbr.rel (%p666) target = $region56
        $region55: #{tpu_custom_call.1} parent=23 // pred_region
          %s669 = sand.u32 %s50, 1
          %s670 = scalar_lea.sflag [#allocation16], %s669
          %s671 = sand.u32 %s254, 1
          %s672 = scalar_lea.vmem [#allocation15], %s671
          %s674 = ssub.s32 16, 16
          %675 = vsyncadd %s670, %s674
          %s676 = smul.addr %s58, 16
          %s677 = scalar_lea.hbm %s7, %s676
          %s679 = sshll.u32 %s672, 4
          %s680 = int_to_ptr.vmem [resolvable:$true] %s679
          %682 = dma.hbm_to_vmem [thread:$0]  %s677, 16, %s680, %s670
        $region56: #{tpu_custom_call.1} parent=23 // pred_fallthru
          _
        // Predicated region
        $region57: #{tpu_custom_call.1} parent=23 // pred_check
          %p683 = pneg %p290
        $region58: #{tpu_custom_call.1} parent=23 // pred_check_branch
          %685 = sbr.rel (%p683) target = $region60
        $region59: #{tpu_custom_call.1} parent=23 // pred_region
          %s686 = sand.u32 %s50, 1
          %s687 = scalar_lea.sflag [#allocation16], %s686
          %s688 = sand.u32 %s280, 1
          %s689 = smul.addr %s688, 16
          %s690 = scalar_lea.vmem [#allocation17], %s689
          %s692 = ssub.s32 256, 256
          %693 = vsyncadd %s687, %s692
          %s694 = smul.addr %s58, 4
          %s695 = smul.addr %s694, 64
          %s696 = scalar_lea.hbm %s8, %s695
          %s697 = sshll.u32 %s690, 4
          %s698 = int_to_ptr.vmem [resolvable:$true] %s697
          %703 = dma.hbm_to_vmem [thread:$0]  %s696, 256, %s698, %s687, 64, 64, 4
        $region60: #{tpu_custom_call.1} parent=23 // pred_fallthru
          _
        // Predicated region
        $region61: #{tpu_custom_call.1} parent=23 // pred_check
          %p704 = pneg %p316
        $region62: #{tpu_custom_call.1} parent=23 // pred_check_branch
          %706 = sbr.rel (%p704) target = $region64
        $region63: #{tpu_custom_call.1} parent=23 // pred_region
          %s707 = sand.u32 %s50, 1
          %s708 = scalar_lea.sflag [#allocation19], %s707
          %s709 = sand.u32 %s306, 1
          %s710 = scalar_lea.vmem [#allocation18], %s709
          %s712 = ssub.s32 16, 16
          %713 = vsyncadd %s708, %s712
          %s714 = smul.addr %s58, 16
          %s715 = scalar_lea.hbm %s9, %s714
          %s717 = sshll.u32 %s710, 4
          %s718 = int_to_ptr.vmem [resolvable:$true] %s717
          %720 = dma.hbm_to_vmem [thread:$0]  %s715, 16, %s718, %s708
        $region64: #{tpu_custom_call.1} parent=23 // pred_fallthru
          _
        // Predicated region
        $region65: #{tpu_custom_call.1} parent=23 // pred_check
          %p721 = pneg %p342
        $region66: #{tpu_custom_call.1} parent=23 // pred_check_branch
          %723 = sbr.rel (%p721) target = $region68
        $region67: #{tpu_custom_call.1} parent=23 // pred_region
          %s724 = sand.u32 %s50, 1
          %s725 = scalar_lea.sflag [#allocation19], %s724
          %s726 = sand.u32 %s332, 1
          %s727 = smul.addr %s726, 16
          %s728 = scalar_lea.vmem [#allocation20], %s727
          %s730 = ssub.s32 256, 256
          %731 = vsyncadd %s725, %s730
          %s732 = smul.addr %s58, 4
          %s733 = smul.addr %s732, 64
          %s734 = scalar_lea.hbm %s10, %s733
          %s735 = sshll.u32 %s728, 4
          %s736 = int_to_ptr.vmem [resolvable:$true] %s735
          %741 = dma.hbm_to_vmem [thread:$0]  %s734, 256, %s736, %s725, 64, 64, 4
        $region68: #{tpu_custom_call.1} parent=23 // pred_fallthru
          _
        // Predicated region
        $region69: #{tpu_custom_call.1} parent=23 // pred_check
          %p742 = pneg %p368
        $region70: #{tpu_custom_call.1} parent=23 // pred_check_branch
          %744 = sbr.rel (%p742) target = $region72
        $region71: #{tpu_custom_call.1} parent=23 // pred_region
          %s745 = sand.u32 %s50, 1
          %s746 = scalar_lea.sflag [#allocation22], %s745
          %s747 = sand.u32 %s358, 1
          %s748 = scalar_lea.vmem [#allocation21], %s747
          %s750 = ssub.s32 16, 16
          %751 = vsyncadd %s746, %s750
          %s752 = smul.addr %s58, 16
          %s753 = scalar_lea.hbm %s11, %s752
          %s755 = sshll.u32 %s748, 4
          %s756 = int_to_ptr.vmem [resolvable:$true] %s755
          %758 = dma.hbm_to_vmem [thread:$0]  %s753, 16, %s756, %s746
        $region72: #{tpu_custom_call.1} parent=23 // pred_fallthru
          _
        // Predicated region
        $region73: #{tpu_custom_call.1} parent=23 // pred_check
          %p759 = pneg %p394
        $region74: #{tpu_custom_call.1} parent=23 // pred_check_branch
          %761 = sbr.rel (%p759) target = $region76
        $region75: #{tpu_custom_call.1} parent=23 // pred_region
          %s762 = sand.u32 %s50, 1
          %s763 = scalar_lea.sflag [#allocation22], %s762
          %s764 = sand.u32 %s384, 1
          %s765 = scalar_lea.vmem [#allocation23], %s764
          %s767 = ssub.s32 16, 16
          %768 = vsyncadd %s763, %s767
          %s769 = smul.addr %s58, 16
          %s770 = scalar_lea.hbm %s12, %s769
          %s772 = sshll.u32 %s765, 4
          %s773 = int_to_ptr.vmem [resolvable:$true] %s772
          %775 = dma.hbm_to_vmem [thread:$0]  %s770, 16, %s773, %s763
        $region76: #{tpu_custom_call.1} parent=23 // pred_fallthru
          _
        // Predicated region
        $region77: #{tpu_custom_call.1} parent=23 // pred_check
          %p776 = pneg %p420
        $region78: #{tpu_custom_call.1} parent=23 // pred_check_branch
          %778 = sbr.rel (%p776) target = $region80
        $region79: #{tpu_custom_call.1} parent=23 // pred_region
          %s779 = sand.u32 %s50, 1
          %s780 = scalar_lea.sflag [#allocation25], %s779
          %s781 = sand.u32 %s410, 1
          %s782 = scalar_lea.vmem [#allocation24], %s781
          %s784 = ssub.s32 16, 16
          %785 = vsyncadd %s780, %s784
          %s786 = smul.addr %s58, 16
          %s787 = scalar_lea.hbm %s13, %s786
          %s789 = sshll.u32 %s782, 4
          %s790 = int_to_ptr.vmem [resolvable:$true] %s789
          %792 = dma.hbm_to_vmem [thread:$0]  %s787, 16, %s790, %s780
        $region80: #{tpu_custom_call.1} parent=23 // pred_fallthru
          _
      $region24: #{tpu_custom_call.1} parent=5 // pred_fallthru
        _
      %p793 = scmp.le.s32.totalorder 1, %s50
      %p794 = scmp.lt.s32.totalorder %s50, 5
      %p795 = pnand %p793, %p794
      %p796 = pneg %p795
      // Predicated region
      $region81: #{tpu_custom_call.1} parent=5 // pred_check
        _
      $region82: #{tpu_custom_call.1} parent=5 // pred_check_branch
        %798 = sbr.rel (%p795) target = $region84
      $region83: #{tpu_custom_call.1} parent=5 // pred_region
        %s799 = ssub.s32 %s50, 1
        %s800 = sand.u32 %s75, 1
        %s801 = scalar_lea.sflag [#allocation4], %s800
        %s802 = sand.u32 %s75, 1
        %s803 = smul.addr %s802, 16
        %s804 = scalar_lea.vmem [#allocation3], %s803
        // Predicated region
        $region85: #{tpu_custom_call.1} parent=83 // pred_check
          %p805 = pneg %p88
        $region86: #{tpu_custom_call.1} parent=83 // pred_check_branch
          %807 = sbr.rel (%p805) target = $region88
        $region87: #{tpu_custom_call.1} parent=83 // pred_region
          %808 = dma.done %s801, 256
        $region88: #{tpu_custom_call.1} parent=83 // pred_fallthru
          _
        %s809 = sand.u32 %s55, 1
        %s810 = scalar_lea.sflag [#allocation7], %s809
        %s811 = sand.u32 %s101, 1
        %s812 = scalar_lea.vmem [#allocation6], %s811
        // Predicated region
        $region89: #{tpu_custom_call.1} parent=83 // pred_check
          %p813 = pneg %p114
        $region90: #{tpu_custom_call.1} parent=83 // pred_check_branch
          %815 = sbr.rel (%p813) target = $region92
        $region91: #{tpu_custom_call.1} parent=83 // pred_region
          %816 = dma.done %s810, 16
        $region92: #{tpu_custom_call.1} parent=83 // pred_fallthru
          _
        %s817 = sand.u32 %s55, 1
        %s818 = scalar_lea.sflag [#allocation7], %s817
        %s819 = sand.u32 %s127, 1
        %s820 = smul.addr %s819, 16
        %s821 = scalar_lea.vmem [#allocation8], %s820
        // Predicated region
        $region93: #{tpu_custom_call.1} parent=83 // pred_check
          %p822 = pneg %p140
        $region94: #{tpu_custom_call.1} parent=83 // pred_check_branch
          %824 = sbr.rel (%p822) target = $region96
        $region95: #{tpu_custom_call.1} parent=83 // pred_region
          %825 = dma.done %s818, 256
        $region96: #{tpu_custom_call.1} parent=83 // pred_fallthru
          _
        %s826 = sand.u32 %s55, 1
        %s827 = scalar_lea.sflag [#allocation10], %s826
        %s828 = sand.u32 %s153, 1
        %s829 = scalar_lea.vmem [#allocation9], %s828
        // Predicated region
        $region97: #{tpu_custom_call.1} parent=83 // pred_check
          %p830 = pneg %p166
        $region98: #{tpu_custom_call.1} parent=83 // pred_check_branch
          %832 = sbr.rel (%p830) target = $region100
        $region99: #{tpu_custom_call.1} parent=83 // pred_region
          %833 = dma.done %s827, 16
        $region100: #{tpu_custom_call.1} parent=83 // pred_fallthru
          _
        %s834 = sand.u32 %s55, 1
        %s835 = scalar_lea.sflag [#allocation10], %s834
        %s836 = sand.u32 %s179, 1
        %s837 = smul.addr %s836, 16
        %s838 = scalar_lea.vmem [#allocation11], %s837
        // Predicated region
        $region101: #{tpu_custom_call.1} parent=83 // pred_check
          %p839 = pneg %p192
        $region102: #{tpu_custom_call.1} parent=83 // pred_check_branch
          %841 = sbr.rel (%p839) target = $region104
        $region103: #{tpu_custom_call.1} parent=83 // pred_region
          %842 = dma.done %s835, 256
        $region104: #{tpu_custom_call.1} parent=83 // pred_fallthru
          _
        %s843 = sand.u32 %s55, 1
        %s844 = scalar_lea.sflag [#allocation13], %s843
        %s845 = sand.u32 %s205, 1
        %s846 = scalar_lea.vmem [#allocation12], %s845
        // Predicated region
        $region105: #{tpu_custom_call.1} parent=83 // pred_check
          %p847 = pneg %p218
        $region106: #{tpu_custom_call.1} parent=83 // pred_check_branch
          %849 = sbr.rel (%p847) target = $region108
        $region107: #{tpu_custom_call.1} parent=83 // pred_region
          %850 = dma.done %s844, 16
        $region108: #{tpu_custom_call.1} parent=83 // pred_fallthru
          _
        %s851 = sand.u32 %s55, 1
        %s852 = scalar_lea.sflag [#allocation13], %s851
        %s853 = sand.u32 %s231, 1
        %s854 = scalar_lea.vmem [#allocation14], %s853
        // Predicated region
        $region109: #{tpu_custom_call.1} parent=83 // pred_check
          %p855 = pneg %p244
        $region110: #{tpu_custom_call.1} parent=83 // pred_check_branch
          %857 = sbr.rel (%p855) target = $region112
        $region111: #{tpu_custom_call.1} parent=83 // pred_region
          %858 = dma.done %s852, 16
        $region112: #{tpu_custom_call.1} parent=83 // pred_fallthru
          _
        %s859 = sand.u32 %s55, 1
        %s860 = scalar_lea.sflag [#allocation16], %s859
        %s861 = sand.u32 %s257, 1
        %s862 = scalar_lea.vmem [#allocation15], %s861
        // Predicated region
        $region113: #{tpu_custom_call.1} parent=83 // pred_check
          %p863 = pneg %p270
        $region114: #{tpu_custom_call.1} parent=83 // pred_check_branch
          %865 = sbr.rel (%p863) target = $region116
        $region115: #{tpu_custom_call.1} parent=83 // pred_region
          %866 = dma.done %s860, 16
        $region116: #{tpu_custom_call.1} parent=83 // pred_fallthru
          _
        %s867 = sand.u32 %s55, 1
        %s868 = scalar_lea.sflag [#allocation16], %s867
        %s869 = sand.u32 %s283, 1
        %s870 = smul.addr %s869, 16
        %s871 = scalar_lea.vmem [#allocation17], %s870
        // Predicated region
        $region117: #{tpu_custom_call.1} parent=83 // pred_check
          %p872 = pneg %p296
        $region118: #{tpu_custom_call.1} parent=83 // pred_check_branch
          %874 = sbr.rel (%p872) target = $region120
        $region119: #{tpu_custom_call.1} parent=83 // pred_region
          %875 = dma.done %s868, 256
        $region120: #{tpu_custom_call.1} parent=83 // pred_fallthru
          _
        %s876 = sand.u32 %s55, 1
        %s877 = scalar_lea.sflag [#allocation19], %s876
        %s878 = sand.u32 %s309, 1
        %s879 = scalar_lea.vmem [#allocation18], %s878
        // Predicated region
        $region121: #{tpu_custom_call.1} parent=83 // pred_check
          %p880 = pneg %p322
        $region122: #{tpu_custom_call.1} parent=83 // pred_check_branch
          %882 = sbr.rel (%p880) target = $region124
        $region123: #{tpu_custom_call.1} parent=83 // pred_region
          %883 = dma.done %s877, 16
        $region124: #{tpu_custom_call.1} parent=83 // pred_fallthru
          _
        %s884 = sand.u32 %s55, 1
        %s885 = scalar_lea.sflag [#allocation19], %s884
        %s886 = sand.u32 %s335, 1
        %s887 = smul.addr %s886, 16
        %s888 = scalar_lea.vmem [#allocation20], %s887
        // Predicated region
        $region125: #{tpu_custom_call.1} parent=83 // pred_check
          %p889 = pneg %p348
        $region126: #{tpu_custom_call.1} parent=83 // pred_check_branch
          %891 = sbr.rel (%p889) target = $region128
        $region127: #{tpu_custom_call.1} parent=83 // pred_region
          %892 = dma.done %s885, 256
        $region128: #{tpu_custom_call.1} parent=83 // pred_fallthru
          _
        %s893 = sand.u32 %s55, 1
        %s894 = scalar_lea.sflag [#allocation22], %s893
        %s895 = sand.u32 %s361, 1
        %s896 = scalar_lea.vmem [#allocation21], %s895
        // Predicated region
        $region129: #{tpu_custom_call.1} parent=83 // pred_check
          %p897 = pneg %p374
        $region130: #{tpu_custom_call.1} parent=83 // pred_check_branch
          %899 = sbr.rel (%p897) target = $region132
        $region131: #{tpu_custom_call.1} parent=83 // pred_region
          %900 = dma.done %s894, 16
        $region132: #{tpu_custom_call.1} parent=83 // pred_fallthru
          _
        %s901 = sand.u32 %s55, 1
        %s902 = scalar_lea.sflag [#allocation22], %s901
        %s903 = sand.u32 %s387, 1
        %s904 = scalar_lea.vmem [#allocation23], %s903
        // Predicated region
        $region133: #{tpu_custom_call.1} parent=83 // pred_check
          %p905 = pneg %p400
        $region134: #{tpu_custom_call.1} parent=83 // pred_check_branch
          %907 = sbr.rel (%p905) target = $region136
        $region135: #{tpu_custom_call.1} parent=83 // pred_region
          %908 = dma.done %s902, 16
        $region136: #{tpu_custom_call.1} parent=83 // pred_fallthru
          _
        %s909 = sand.u32 %s55, 1
        %s910 = scalar_lea.sflag [#allocation25], %s909
        %s911 = sand.u32 %s413, 1
        %s912 = scalar_lea.vmem [#allocation24], %s911
        // Predicated region
        $region137: #{tpu_custom_call.1} parent=83 // pred_check
          %p913 = pneg %p426
        $region138: #{tpu_custom_call.1} parent=83 // pred_check_branch
          %915 = sbr.rel (%p913) target = $region140
        $region139: #{tpu_custom_call.1} parent=83 // pred_region
          %916 = dma.done %s910, 16
        $region140: #{tpu_custom_call.1} parent=83 // pred_fallthru
          _
        // Predicated region
        $region141: #{tpu_custom_call.1} parent=83 // pred_check
          %p917 = pneg %p447
        $region142: #{tpu_custom_call.1} parent=83 // pred_check_branch
          %919 = sbr.rel (%p917) target = $region144
        $region143: #{tpu_custom_call.1} parent=83 // pred_region
          %920 = dma.done [#allocation25], 16
        $region144: #{tpu_custom_call.1} parent=83 // pred_fallthru
          _
        // Predicated region
        $region145: #{tpu_custom_call.1} parent=83 // pred_check
          %p921 = pneg %p468
        $region146: #{tpu_custom_call.1} parent=83 // pred_check_branch
          %923 = sbr.rel (%p921) target = $region148
        $region147: #{tpu_custom_call.1} parent=83 // pred_region
          %924 = dma.done [#allocation28], 16
        $region148: #{tpu_custom_call.1} parent=83 // pred_fallthru
          _
        %s925 = sand.u32 %s75, 1
        %s926 = scalar_lea.sflag [#allocation4], %s925
        %s927 = sand.u32 %s75, 1
        %s928 = smul.addr %s927, 16
        %s929 = scalar_lea.vmem [#allocation3], %s928
        %p930 = pneg %p88
        %p931 = pneg %p85
        %s932 = sand.u32 %s55, 1
        %s933 = scalar_lea.sflag [#allocation7], %s932
        %s934 = sand.u32 %s101, 1
        %s935 = scalar_lea.vmem [#allocation6], %s934
        %p936 = pneg %p114
        %p937 = pneg %p111
        %s938 = sand.u32 %s55, 1
        %s939 = scalar_lea.sflag [#allocation7], %s938
        %s940 = sand.u32 %s127, 1
        %s941 = smul.addr %s940, 16
        %s942 = scalar_lea.vmem [#allocation8], %s941
        %p943 = pneg %p140
        %p944 = pneg %p137
        %s945 = sand.u32 %s55, 1
        %s946 = scalar_lea.sflag [#allocation10], %s945
        %s947 = sand.u32 %s153, 1
        %s948 = scalar_lea.vmem [#allocation9], %s947
        %p949 = pneg %p166
        %p950 = pneg %p163
        %s951 = sand.u32 %s55, 1
        %s952 = scalar_lea.sflag [#allocation10], %s951
        %s953 = sand.u32 %s179, 1
        %s954 = smul.addr %s953, 16
        %s955 = scalar_lea.vmem [#allocation11], %s954
        %p956 = pneg %p192
        %p957 = pneg %p189
        %s958 = sand.u32 %s55, 1
        %s959 = scalar_lea.sflag [#allocation13], %s958
        %s960 = sand.u32 %s205, 1
        %s961 = scalar_lea.vmem [#allocation12], %s960
        %p962 = pneg %p218
        %p963 = pneg %p215
        %s964 = sand.u32 %s55, 1
        %s965 = scalar_lea.sflag [#allocation13], %s964
        %s966 = sand.u32 %s231, 1
        %s967 = scalar_lea.vmem [#allocation14], %s966
        %p968 = pneg %p244
        %p969 = pneg %p241
        %s970 = sand.u32 %s55, 1
        %s971 = scalar_lea.sflag [#allocation16], %s970
        %s972 = sand.u32 %s257, 1
        %s973 = scalar_lea.vmem [#allocation15], %s972
        %p974 = pneg %p270
        %p975 = pneg %p267
        %s976 = sand.u32 %s55, 1
        %s977 = scalar_lea.sflag [#allocation16], %s976
        %s978 = sand.u32 %s283, 1
        %s979 = smul.addr %s978, 16
        %s980 = scalar_lea.vmem [#allocation17], %s979
        %p981 = pneg %p296
        %p982 = pneg %p293
        %s983 = sand.u32 %s55, 1
        %s984 = scalar_lea.sflag [#allocation19], %s983
        %s985 = sand.u32 %s309, 1
        %s986 = scalar_lea.vmem [#allocation18], %s985
        %p987 = pneg %p322
        %p988 = pneg %p319
        %s989 = sand.u32 %s55, 1
        %s990 = scalar_lea.sflag [#allocation19], %s989
        %s991 = sand.u32 %s335, 1
        %s992 = smul.addr %s991, 16
        %s993 = scalar_lea.vmem [#allocation20], %s992
        %p994 = pneg %p348
        %p995 = pneg %p345
        %s996 = sand.u32 %s55, 1
        %s997 = scalar_lea.sflag [#allocation22], %s996
        %s998 = sand.u32 %s361, 1
        %s999 = scalar_lea.vmem [#allocation21], %s998
        %p1000 = pneg %p374
        %p1001 = pneg %p371
        %s1002 = sand.u32 %s55, 1
        %s1003 = scalar_lea.sflag [#allocation22], %s1002
        %s1004 = sand.u32 %s387, 1
        %s1005 = scalar_lea.vmem [#allocation23], %s1004
        %p1006 = pneg %p400
        %p1007 = pneg %p397
        %s1008 = sand.u32 %s55, 1
        %s1009 = scalar_lea.sflag [#allocation25], %s1008
        %s1010 = sand.u32 %s413, 1
        %s1011 = scalar_lea.vmem [#allocation24], %s1010
        %p1012 = pneg %p426
        %p1013 = pneg %p423
        %p1014 = pneg %p447
        %p1015 = pneg %p444
        %p1016 = pneg %p468
        %p1017 = pneg %p465
        %p1018 = pneg %p494
        %p1019 = pneg %p491
        %s1020 = sand.u32 %s481, 1
        %s1021 = scalar_lea.sflag [#allocation5], %s1020
        %s1022 = sand.u32 %s481, 1
        %s1023 = scalar_lea.vmem [#allocation29], %s1022
        %p1025 = scmp.eq.s32.totalorder %s60, 0
        // Predicated region
        $region149: #{tpu_custom_call.1} parent=83 // pred_check
          %p1026 = pneg %p1025
        $region150: #{tpu_custom_call.1} parent=83 // pred_check_branch
          %1028 = sbr.rel (%p1026) target = $region152
        $region151: #{tpu_custom_call.1} parent=83 // pred_region
          %v1029 = vld [vmem:[%s804] sm:$0xff]
          %v1030 = vld [vmem:[%s804 + $0x8] sm:$0xff]
          %vm1031 = vcmask 261120
          %1032 = vst.msk [vmem:[#allocation2] sm:$0xff] %vm1031, %v1029
          %1033 = vst.msk [vmem:[#allocation2 + $0x8] sm:$0xff] %vm1031, %v1030
        $region152: #{tpu_custom_call.1} parent=83 // pred_fallthru
          _
        %v1034 = vld [vmem:[#allocation2] sm:$0xff]
        %v1035 = vld [vmem:[#allocation2 + $0x8] sm:$0xff]
        %v1036 = vpack.c.bf16 %v1035, %v1034
        %v1037 = vld [vmem:[%s821] sm:$0xf]
        %v1038 = vld [vmem:[%s821 + $0x4] sm:$0xf]
        %v1039 = vld [vmem:[%s821 + $0x8] sm:$0xf]
        %v1040 = vld [vmem:[%s821 + $0xc] sm:$0xf]
        %v1041 = vld [vmem:[%s829] sm:$0x1]
        %v1043 = vlaneseq
        %v1044 = vshrl.u32 %v1043, 7
        %v1045 = vsub.s32 0, %v1044
        %v1046 = vrot.slane %v1041, %v1045
        %v1052 = vunpack.c.l.b16 %v1037
        %v1053 = vunpack.c.l.b16 %v1038
        %v1054 = vunpack.c.l.b16 %v1039
        %v1055 = vunpack.c.l.b16 %v1040
        %v1056 = vpack.c.b16 %v1053, %v1052
        %v1057 = vpack.c.b16 %v1055, %v1054
        %vm1060 = vcmask 261120
        %v1062 = vsel %vm1060, %v1036, 0
        %1064 = vmatprep.subr.bf16.mxu0 0
        %1065 = vmatpush1.bf16.msra.mxu0 %v1056
        %1066 = vmatprep.subr.bf16.mxu0 0
        %1067 = vmatpush1.bf16.msra.mxu0 %v1057
        %1068 = vmatprep.subr.bf16.mxu0 0
        %1069 = vmatpush1.bf16.msra.mxu0 0
        %1070 = vmatprep.subr.bf16.mxu0 0
        %1071 = vmatpush1.bf16.msra.mxu0 0
        %1072 = vmatprep.subr.bf16.mxu0 0
        %1073 = vmatpush1.bf16.msra.mxu0 0
        %1074 = vmatprep.subr.bf16.mxu0 0
        %1075 = vmatpush1.bf16.msra.mxu0 0
        %1076 = vmatprep.subr.bf16.mxu0 0
        %1077 = vmatpush1.bf16.msra.mxu0 0
        %1078 = vmatprep.subr.bf16.mxu0 0
        %1079 = vmatpush1.bf16.msra.mxu0 0
        %1080 = vmatprep.subr.bf16.mxu0 0
        %1081 = vmatpush1.bf16.msra.mxu0 0
        %1082 = vmatprep.subr.bf16.mxu0 0
        %1083 = vmatpush1.bf16.msra.mxu0 0
        %1084 = vmatprep.subr.bf16.mxu0 0
        %1085 = vmatpush1.bf16.msra.mxu0 0
        %1086 = vmatprep.subr.bf16.mxu0 0
        %1087 = vmatpush1.bf16.msra.mxu0 0
        %1088 = vmatprep.subr.bf16.mxu0 0
        %1089 = vmatpush1.bf16.msra.mxu0 0
        %1090 = vmatprep.subr.bf16.mxu0 0
        %1091 = vmatpush1.bf16.msra.mxu0 0
        %1092 = vmatprep.subr.bf16.mxu0 0
        %1093 = vmatpush1.bf16.msra.mxu0 0
        %1094 = vmatprep.subr.bf16.mxu0 0
        %1095 = vmatpush1.bf16.msra.mxu0 0
        %1096 = vmatprep.mubr.bf16.mxu0 0
        %1097 = vmatmul.mubr.bf16.gmra.mrb[0].mxu0 %v1062
        %v1098 = vpop.f32.mrb[0].mxu0
        %v1099 = vadd.f32 %v1046, %v1098
        %v1100 = vpop.f32.mrb[0].mxu0
        %v1101 = vpop.f32.mrb[0].mxu0
        %v1102 = vadd.f32 %v1046, %v1101
        %v1103 = vpop.f32.mrb[0].mxu0
        %1104 = vdwg.mxu0
        %v1105 = vpack.c.bf16 %v1102, %v1099
        %v1106 = vld [vmem:[%s812] sm:$0x1]
        %v1108 = vlaneseq
        %v1109 = vshrl.u32 %v1108, 7
        %v1110 = vsub.s32 0, %v1109
        %v1111 = vrot.slane %v1106, %v1110
        %1114 = vrot.lane.b32.xlu0 %v1105, 96
        %v1115 = vpop.permute.xlu0 %1114
        %vm1116 = vcmask 64512
        %v1118 = vsel %vm1116, %v1105, 0
        %v1121 = vsel %vm1116, %v1115, 0
        %1123 = vmatprep.subr.bf16.mxu0 0
        %1124 = vmatpush1.bf16.xpose.msra.mxu0 %v1121
        %1125 = vmatprep.subr.bf16.mxu0 0
        %1126 = vmatpush1.bf16.xpose.msra.mxu0 0
        %1127 = vmatprep.subr.bf16.mxu0 0
        %1128 = vmatpush1.bf16.xpose.msra.mxu0 0
        %1129 = vmatprep.subr.bf16.mxu0 0
        %1130 = vmatpush1.bf16.xpose.msra.mxu0 0
        %1131 = vmatprep.subr.bf16.mxu0 0
        %1132 = vmatpush1.bf16.xpose.msra.mxu0 0
        %1133 = vmatprep.subr.bf16.mxu0 0
        %1134 = vmatpush1.bf16.xpose.msra.mxu0 0
        %1135 = vmatprep.subr.bf16.mxu0 0
        %1136 = vmatpush1.bf16.xpose.msra.mxu0 0
        %1137 = vmatprep.subr.bf16.mxu0 0
        %1138 = vmatpush1.bf16.xpose.msra.mxu0 0
        %1139 = vmatprep.subr.bf16.mxu0 0
        %1140 = vmatpush1.bf16.xpose.msra.mxu0 0
        %1141 = vmatprep.subr.bf16.mxu0 0
        %1142 = vmatpush1.bf16.xpose.msra.mxu0 0
        %1143 = vmatprep.subr.bf16.mxu0 0
        %1144 = vmatpush1.bf16.xpose.msra.mxu0 0
        %1145 = vmatprep.subr.bf16.mxu0 0
        %1146 = vmatpush1.bf16.xpose.msra.mxu0 0
        %1147 = vmatprep.subr.bf16.mxu0 0
        %1148 = vmatpush1.bf16.xpose.msra.mxu0 0
        %1149 = vmatprep.subr.bf16.mxu0 0
        %1150 = vmatpush1.bf16.xpose.msra.mxu0 0
        %1151 = vmatprep.subr.bf16.mxu0 0
        %1152 = vmatpush1.bf16.xpose.msra.mxu0 0
        %1153 = vmatprep.subr.bf16.mxu0 0
        %1154 = vmatpush1.bf16.xpose.msra.mxu0 0
        %1155 = vmatprep.mubr.bf16.mxu0 0
        %1156 = vmatmul.mubr.bf16.gmra.mrb[0].mxu0 %v1118
        %v1157 = vpop.f32.mrb[0].mxu0
        %v1158 = vadd.f32 %v1111, %v1157
        %v1159 = vpop.f32.mrb[0].mxu0
        %v1160 = vpop.f32.mrb[0].mxu0
        %v1161 = vadd.f32 %v1111, %v1160
        %v1162 = vpop.f32.mrb[0].mxu0
        %1163 = vdwg.mxu0
        %vm1164 = vcmask 130048
        %v1165 = vsel %vm1164, %v1158, -inf
        %1166 = vmax.xlane.f32.xlu0 %v1165
        %v1167 = vpop.xlane.xlu0 %1166
        %v1168 = vsel %vm1164, %v1161, -inf
        %1169 = vmax.xlane.f32.xlu0 %v1168
        %v1170 = vpop.xlane.xlu0 %1169
        %v1171 = vsub.f32 %v1158, %v1167
        %v1172 = vsub.f32 %v1161, %v1170
        %v1173 = vmul.f32 %v1171, 1.442695
        %v1174 = vpow.pop %v1173
        %v1175 = vmul.f32 %v1172, 1.442695
        %v1176 = vpow.pop %v1175
        %v1177 = vsel %vm1164, %v1174, 0.0
        %1178 = vadd.xlane.f32.xlu0 %v1177
        %v1179 = vpop.xlane.xlu0 %1178
        %v1180 = vsel %vm1164, %v1176, 0.0
        %1181 = vadd.xlane.f32.xlu0 %v1180
        %v1182 = vpop.xlane.xlu0 %1181
        %v1183 = vrcp.pop %v1179
        %v1184 = vrcp.pop %v1182
        %v1185 = vmul.f32 %v1174, %v1183
        %v1186 = vmul.f32 %v1176, %v1184
        %v1187 = vpack.c.bf16 %v1186, %v1185
        %1188 = vrot.lane.b32.xlu0 %v1105, 64
        %v1189 = vpop.permute.xlu0 %1188
        %v1192 = vsel %vm1164, %v1187, 0
        %1194 = vmatprep.subr.bf16.mxu0 0
        %1195 = vmatpush1.bf16.msra.mxu0 %v1189
        %1196 = vmatprep.subr.bf16.mxu0 0
        %1197 = vmatpush1.bf16.msra.mxu0 0
        %1198 = vmatprep.subr.bf16.mxu0 0
        %1199 = vmatpush1.bf16.msra.mxu0 0
        %1200 = vmatprep.subr.bf16.mxu0 0
        %1201 = vmatpush1.bf16.msra.mxu0 0
        %1202 = vmatprep.subr.bf16.mxu0 0
        %1203 = vmatpush1.bf16.msra.mxu0 0
        %1204 = vmatprep.subr.bf16.mxu0 0
        %1205 = vmatpush1.bf16.msra.mxu0 0
        %1206 = vmatprep.subr.bf16.mxu0 0
        %1207 = vmatpush1.bf16.msra.mxu0 0
        %1208 = vmatprep.subr.bf16.mxu0 0
        %1209 = vmatpush1.bf16.msra.mxu0 0
        %1210 = vmatprep.subr.bf16.mxu0 0
        %1211 = vmatpush1.bf16.msra.mxu0 0
        %1212 = vmatprep.subr.bf16.mxu0 0
        %1213 = vmatpush1.bf16.msra.mxu0 0
        %1214 = vmatprep.subr.bf16.mxu0 0
        %1215 = vmatpush1.bf16.msra.mxu0 0
        %1216 = vmatprep.subr.bf16.mxu0 0
        %1217 = vmatpush1.bf16.msra.mxu0 0
        %1218 = vmatprep.subr.bf16.mxu0 0
        %1219 = vmatpush1.bf16.msra.mxu0 0
        %1220 = vmatprep.subr.bf16.mxu0 0
        %1221 = vmatpush1.bf16.msra.mxu0 0
        %1222 = vmatprep.subr.bf16.mxu0 0
        %1223 = vmatpush1.bf16.msra.mxu0 0
        %1224 = vmatprep.subr.bf16.mxu0 0
        %1225 = vmatpush1.bf16.msra.mxu0 0
        %1226 = vmatprep.mubr.bf16.mxu0 0
        %1227 = vmatmul.mubr.bf16.gmra.mrb[0].mxu0 %v1192
        %v1228 = vpop.f32.mrb[0].mxu0
        %v1229 = vadd.f32 0.0, %v1228
        %v1230 = vpop.f32.mrb[0].mxu0
        %v1231 = vpop.f32.mrb[0].mxu0
        %v1232 = vadd.f32 0.0, %v1231
        %v1233 = vpop.f32.mrb[0].mxu0
        %1234 = vdwg.mxu0
        %1235 = vrot.lane.b32.xlu0 %v1105, 120
        %v1236 = vpop.permute.xlu0 %1235
        %1237 = vrot.lane.b32.xlu0 %v1105, 88
        %v1238 = vpop.permute.xlu0 %1237
        %v1240 = vsel %vm1116, %v1236, 0
        %v1243 = vsel %vm1116, %v1238, 0
        %1245 = vmatprep.subr.bf16.mxu0 0
        %1246 = vmatpush1.bf16.xpose.msra.mxu0 %v1243
        %1247 = vmatprep.subr.bf16.mxu0 0
        %1248 = vmatpush1.bf16.xpose.msra.mxu0 0
        %1249 = vmatprep.subr.bf16.mxu0 0
        %1250 = vmatpush1.bf16.xpose.msra.mxu0 0
        %1251 = vmatprep.subr.bf16.mxu0 0
        %1252 = vmatpush1.bf16.xpose.msra.mxu0 0
        %1253 = vmatprep.subr.bf16.mxu0 0
        %1254 = vmatpush1.bf16.xpose.msra.mxu0 0
        %1255 = vmatprep.subr.bf16.mxu0 0
        %1256 = vmatpush1.bf16.xpose.msra.mxu0 0
        %1257 = vmatprep.subr.bf16.mxu0 0
        %1258 = vmatpush1.bf16.xpose.msra.mxu0 0
        %1259 = vmatprep.subr.bf16.mxu0 0
        %1260 = vmatpush1.bf16.xpose.msra.mxu0 0
        %1261 = vmatprep.subr.bf16.mxu0 0
        %1262 = vmatpush1.bf16.xpose.msra.mxu0 0
        %1263 = vmatprep.subr.bf16.mxu0 0
        %1264 = vmatpush1.bf16.xpose.msra.mxu0 0
        %1265 = vmatprep.subr.bf16.mxu0 0
        %1266 = vmatpush1.bf16.xpose.msra.mxu0 0
        %1267 = vmatprep.subr.bf16.mxu0 0
        %1268 = vmatpush1.bf16.xpose.msra.mxu0 0
        %1269 = vmatprep.subr.bf16.mxu0 0
        %1270 = vmatpush1.bf16.xpose.msra.mxu0 0
        %1271 = vmatprep.subr.bf16.mxu0 0
        %1272 = vmatpush1.bf16.xpose.msra.mxu0 0
        %1273 = vmatprep.subr.bf16.mxu0 0
        %1274 = vmatpush1.bf16.xpose.msra.mxu0 0
        %1275 = vmatprep.subr.bf16.mxu0 0
        %1276 = vmatpush1.bf16.xpose.msra.mxu0 0
        %1277 = vmatprep.mubr.bf16.mxu0 0
        %1278 = vmatmul.mubr.bf16.gmra.mrb[0].mxu0 %v1240
        %v1279 = vpop.f32.mrb[0].mxu0
        %v1280 = vadd.f32 %v1111, %v1279
        %v1281 = vpop.f32.mrb[0].mxu0
        %v1282 = vpop.f32.mrb[0].mxu0
        %v1283 = vadd.f32 %v1111, %v1282
        %v1284 = vpop.f32.mrb[0].mxu0
        %1285 = vdwg.mxu0
        %v1286 = vsel %vm1164, %v1280, -inf
        %1287 = vmax.xlane.f32.xlu0 %v1286
        %v1288 = vpop.xlane.xlu0 %1287
        %v1289 = vsel %vm1164, %v1283, -inf
        %1290 = vmax.xlane.f32.xlu0 %v1289
        %v1291 = vpop.xlane.xlu0 %1290
        %v1292 = vsub.f32 %v1280, %v1288
        %v1293 = vsub.f32 %v1283, %v1291
        %v1294 = vmul.f32 %v1292, 1.442695
        %v1295 = vpow.pop %v1294
        %v1296 = vmul.f32 %v1293, 1.442695
        %v1297 = vpow.pop %v1296
        %v1298 = vsel %vm1164, %v1295, 0.0
        %1299 = vadd.xlane.f32.xlu0 %v1298
        %v1300 = vpop.xlane.xlu0 %1299
        %v1301 = vsel %vm1164, %v1297, 0.0
        %1302 = vadd.xlane.f32.xlu0 %v1301
        %v1303 = vpop.xlane.xlu0 %1302
        %v1304 = vrcp.pop %v1300
        %v1305 = vrcp.pop %v1303
        %v1306 = vmul.f32 %v1295, %v1304
        %v1307 = vmul.f32 %v1297, %v1305
        %v1308 = vpack.c.bf16 %v1307, %v1306
        %1309 = vrot.lane.b32.xlu0 %v1105, 56
        %v1310 = vpop.permute.xlu0 %1309
        %v1313 = vsel %vm1164, %v1308, 0
        %1315 = vmatprep.subr.bf16.mxu0 0
        %1316 = vmatpush1.bf16.msra.mxu0 %v1310
        %1317 = vmatprep.subr.bf16.mxu0 0
        %1318 = vmatpush1.bf16.msra.mxu0 0
        %1319 = vmatprep.subr.bf16.mxu0 0
        %1320 = vmatpush1.bf16.msra.mxu0 0
        %1321 = vmatprep.subr.bf16.mxu0 0
        %1322 = vmatpush1.bf16.msra.mxu0 0
        %1323 = vmatprep.subr.bf16.mxu0 0
        %1324 = vmatpush1.bf16.msra.mxu0 0
        %1325 = vmatprep.subr.bf16.mxu0 0
        %1326 = vmatpush1.bf16.msra.mxu0 0
        %1327 = vmatprep.subr.bf16.mxu0 0
        %1328 = vmatpush1.bf16.msra.mxu0 0
        %1329 = vmatprep.subr.bf16.mxu0 0
        %1330 = vmatpush1.bf16.msra.mxu0 0
        %1331 = vmatprep.subr.bf16.mxu0 0
        %1332 = vmatpush1.bf16.msra.mxu0 0
        %1333 = vmatprep.subr.bf16.mxu0 0
        %1334 = vmatpush1.bf16.msra.mxu0 0
        %1335 = vmatprep.subr.bf16.mxu0 0
        %1336 = vmatpush1.bf16.msra.mxu0 0
        %1337 = vmatprep.subr.bf16.mxu0 0
        %1338 = vmatpush1.bf16.msra.mxu0 0
        %1339 = vmatprep.subr.bf16.mxu0 0
        %1340 = vmatpush1.bf16.msra.mxu0 0
        %1341 = vmatprep.subr.bf16.mxu0 0
        %1342 = vmatpush1.bf16.msra.mxu0 0
        %1343 = vmatprep.subr.bf16.mxu0 0
        %1344 = vmatpush1.bf16.msra.mxu0 0
        %1345 = vmatprep.subr.bf16.mxu0 0
        %1346 = vmatpush1.bf16.msra.mxu0 0
        %1347 = vmatprep.mubr.bf16.mxu0 0
        %1348 = vmatmul.mubr.bf16.gmra.mrb[0].mxu0 %v1313
        %v1349 = vpop.f32.mrb[0].mxu0
        %v1350 = vadd.f32 0.0, %v1349
        %v1351 = vpop.f32.mrb[0].mxu0
        %v1352 = vpop.f32.mrb[0].mxu0
        %v1353 = vadd.f32 0.0, %v1352
        %v1354 = vpop.f32.mrb[0].mxu0
        %1355 = vdwg.mxu0
        %1356 = vrot.lane.b32.xlu0 %v1105, 112
        %v1357 = vpop.permute.xlu0 %1356
        %1358 = vrot.lane.b32.xlu0 %v1105, 80
        %v1359 = vpop.permute.xlu0 %1358
        %v1361 = vsel %vm1116, %v1357, 0
        %v1364 = vsel %vm1116, %v1359, 0
        %1366 = vmatprep.subr.bf16.mxu0 0
        %1367 = vmatpush1.bf16.xpose.msra.mxu0 %v1364
        %1368 = vmatprep.subr.bf16.mxu0 0
        %1369 = vmatpush1.bf16.xpose.msra.mxu0 0
        %1370 = vmatprep.subr.bf16.mxu0 0
        %1371 = vmatpush1.bf16.xpose.msra.mxu0 0
        %1372 = vmatprep.subr.bf16.mxu0 0
        %1373 = vmatpush1.bf16.xpose.msra.mxu0 0
        %1374 = vmatprep.subr.bf16.mxu0 0
        %1375 = vmatpush1.bf16.xpose.msra.mxu0 0
        %1376 = vmatprep.subr.bf16.mxu0 0
        %1377 = vmatpush1.bf16.xpose.msra.mxu0 0
        %1378 = vmatprep.subr.bf16.mxu0 0
        %1379 = vmatpush1.bf16.xpose.msra.mxu0 0
        %1380 = vmatprep.subr.bf16.mxu0 0
        %1381 = vmatpush1.bf16.xpose.msra.mxu0 0
        %1382 = vmatprep.subr.bf16.mxu0 0
        %1383 = vmatpush1.bf16.xpose.msra.mxu0 0
        %1384 = vmatprep.subr.bf16.mxu0 0
        %1385 = vmatpush1.bf16.xpose.msra.mxu0 0
        %1386 = vmatprep.subr.bf16.mxu0 0
        %1387 = vmatpush1.bf16.xpose.msra.mxu0 0
        %1388 = vmatprep.subr.bf16.mxu0 0
        %1389 = vmatpush1.bf16.xpose.msra.mxu0 0
        %1390 = vmatprep.subr.bf16.mxu0 0
        %1391 = vmatpush1.bf16.xpose.msra.mxu0 0
        %1392 = vmatprep.subr.bf16.mxu0 0
        %1393 = vmatpush1.bf16.xpose.msra.mxu0 0
        %1394 = vmatprep.subr.bf16.mxu0 0
        %1395 = vmatpush1.bf16.xpose.msra.mxu0 0
        %1396 = vmatprep.subr.bf16.mxu0 0
        %1397 = vmatpush1.bf16.xpose.msra.mxu0 0
        %1398 = vmatprep.mubr.bf16.mxu0 0
        %1399 = vmatmul.mubr.bf16.gmra.mrb[0].mxu0 %v1361
        %v1400 = vpop.f32.mrb[0].mxu0
        %v1401 = vadd.f32 %v1111, %v1400
        %v1402 = vpop.f32.mrb[0].mxu0
        %v1403 = vpop.f32.mrb[0].mxu0
        %v1404 = vadd.f32 %v1111, %v1403
        %v1405 = vpop.f32.mrb[0].mxu0
        %1406 = vdwg.mxu0
        %v1407 = vsel %vm1164, %v1401, -inf
        %1408 = vmax.xlane.f32.xlu0 %v1407
        %v1409 = vpop.xlane.xlu0 %1408
        %v1410 = vsel %vm1164, %v1404, -inf
        %1411 = vmax.xlane.f32.xlu0 %v1410
        %v1412 = vpop.xlane.xlu0 %1411
        %v1413 = vsub.f32 %v1401, %v1409
        %v1414 = vsub.f32 %v1404, %v1412
        %v1415 = vmul.f32 %v1413, 1.442695
        %v1416 = vpow.pop %v1415
        %v1417 = vmul.f32 %v1414, 1.442695
        %v1418 = vpow.pop %v1417
        %v1419 = vsel %vm1164, %v1416, 0.0
        %1420 = vadd.xlane.f32.xlu0 %v1419
        %v1421 = vpop.xlane.xlu0 %1420
        %v1422 = vsel %vm1164, %v1418, 0.0
        %1423 = vadd.xlane.f32.xlu0 %v1422
        %v1424 = vpop.xlane.xlu0 %1423
        %v1425 = vrcp.pop %v1421
        %v1426 = vrcp.pop %v1424
        %v1427 = vmul.f32 %v1416, %v1425
        %v1428 = vmul.f32 %v1418, %v1426
        %v1429 = vpack.c.bf16 %v1428, %v1427
        %1430 = vrot.lane.b32.xlu0 %v1105, 48
        %v1431 = vpop.permute.xlu0 %1430
        %v1434 = vsel %vm1164, %v1429, 0
        %1436 = vmatprep.subr.bf16.mxu0 0
        %1437 = vmatpush1.bf16.msra.mxu0 %v1431
        %1438 = vmatprep.subr.bf16.mxu0 0
        %1439 = vmatpush1.bf16.msra.mxu0 0
        %1440 = vmatprep.subr.bf16.mxu0 0
        %1441 = vmatpush1.bf16.msra.mxu0 0
        %1442 = vmatprep.subr.bf16.mxu0 0
        %1443 = vmatpush1.bf16.msra.mxu0 0
        %1444 = vmatprep.subr.bf16.mxu0 0
        %1445 = vmatpush1.bf16.msra.mxu0 0
        %1446 = vmatprep.subr.bf16.mxu0 0
        %1447 = vmatpush1.bf16.msra.mxu0 0
        %1448 = vmatprep.subr.bf16.mxu0 0
        %1449 = vmatpush1.bf16.msra.mxu0 0
        %1450 = vmatprep.subr.bf16.mxu0 0
        %1451 = vmatpush1.bf16.msra.mxu0 0
        %1452 = vmatprep.subr.bf16.mxu0 0
        %1453 = vmatpush1.bf16.msra.mxu0 0
        %1454 = vmatprep.subr.bf16.mxu0 0
        %1455 = vmatpush1.bf16.msra.mxu0 0
        %1456 = vmatprep.subr.bf16.mxu0 0
        %1457 = vmatpush1.bf16.msra.mxu0 0
        %1458 = vmatprep.subr.bf16.mxu0 0
        %1459 = vmatpush1.bf16.msra.mxu0 0
        %1460 = vmatprep.subr.bf16.mxu0 0
        %1461 = vmatpush1.bf16.msra.mxu0 0
        %1462 = vmatprep.subr.bf16.mxu0 0
        %1463 = vmatpush1.bf16.msra.mxu0 0
        %1464 = vmatprep.subr.bf16.mxu0 0
        %1465 = vmatpush1.bf16.msra.mxu0 0
        %1466 = vmatprep.subr.bf16.mxu0 0
        %1467 = vmatpush1.bf16.msra.mxu0 0
        %1468 = vmatprep.mubr.bf16.mxu0 0
        %1469 = vmatmul.mubr.bf16.gmra.mrb[0].mxu0 %v1434
        %v1470 = vpop.f32.mrb[0].mxu0
        %v1471 = vadd.f32 0.0, %v1470
        %v1472 = vpop.f32.mrb[0].mxu0
        %v1473 = vpop.f32.mrb[0].mxu0
        %v1474 = vadd.f32 0.0, %v1473
        %v1475 = vpop.f32.mrb[0].mxu0
        %1476 = vdwg.mxu0
        %1477 = vrot.lane.b32.xlu0 %v1105, 104
        %v1478 = vpop.permute.xlu0 %1477
        %1479 = vrot.lane.b32.xlu0 %v1105, 72
        %v1480 = vpop.permute.xlu0 %1479
        %v1482 = vsel %vm1116, %v1478, 0
        %v1485 = vsel %vm1116, %v1480, 0
        %1487 = vmatprep.subr.bf16.mxu0 0
        %1488 = vmatpush1.bf16.xpose.msra.mxu0 %v1485
        %1489 = vmatprep.subr.bf16.mxu0 0
        %1490 = vmatpush1.bf16.xpose.msra.mxu0 0
        %1491 = vmatprep.subr.bf16.mxu0 0
        %1492 = vmatpush1.bf16.xpose.msra.mxu0 0
        %1493 = vmatprep.subr.bf16.mxu0 0
        %1494 = vmatpush1.bf16.xpose.msra.mxu0 0
        %1495 = vmatprep.subr.bf16.mxu0 0
        %1496 = vmatpush1.bf16.xpose.msra.mxu0 0
        %1497 = vmatprep.subr.bf16.mxu0 0
        %1498 = vmatpush1.bf16.xpose.msra.mxu0 0
        %1499 = vmatprep.subr.bf16.mxu0 0
        %1500 = vmatpush1.bf16.xpose.msra.mxu0 0
        %1501 = vmatprep.subr.bf16.mxu0 0
        %1502 = vmatpush1.bf16.xpose.msra.mxu0 0
        %1503 = vmatprep.subr.bf16.mxu0 0
        %1504 = vmatpush1.bf16.xpose.msra.mxu0 0
        %1505 = vmatprep.subr.bf16.mxu0 0
        %1506 = vmatpush1.bf16.xpose.msra.mxu0 0
        %1507 = vmatprep.subr.bf16.mxu0 0
        %1508 = vmatpush1.bf16.xpose.msra.mxu0 0
        %1509 = vmatprep.subr.bf16.mxu0 0
        %1510 = vmatpush1.bf16.xpose.msra.mxu0 0
        %1511 = vmatprep.subr.bf16.mxu0 0
        %1512 = vmatpush1.bf16.xpose.msra.mxu0 0
        %1513 = vmatprep.subr.bf16.mxu0 0
        %1514 = vmatpush1.bf16.xpose.msra.mxu0 0
        %1515 = vmatprep.subr.bf16.mxu0 0
        %1516 = vmatpush1.bf16.xpose.msra.mxu0 0
        %1517 = vmatprep.subr.bf16.mxu0 0
        %1518 = vmatpush1.bf16.xpose.msra.mxu0 0
        %1519 = vmatprep.mubr.bf16.mxu0 0
        %1520 = vmatmul.mubr.bf16.gmra.mrb[0].mxu0 %v1482
        %v1521 = vpop.f32.mrb[0].mxu0
        %v1522 = vadd.f32 %v1111, %v1521
        %v1523 = vpop.f32.mrb[0].mxu0
        %v1524 = vpop.f32.mrb[0].mxu0
        %v1525 = vadd.f32 %v1111, %v1524
        %v1526 = vpop.f32.mrb[0].mxu0
        %1527 = vdwg.mxu0
        %v1528 = vsel %vm1164, %v1522, -inf
        %1529 = vmax.xlane.f32.xlu0 %v1528
        %v1530 = vpop.xlane.xlu0 %1529
        %v1531 = vsel %vm1164, %v1525, -inf
        %1532 = vmax.xlane.f32.xlu0 %v1531
        %v1533 = vpop.xlane.xlu0 %1532
        %v1534 = vsub.f32 %v1522, %v1530
        %v1535 = vsub.f32 %v1525, %v1533
        %v1536 = vmul.f32 %v1534, 1.442695
        %v1537 = vpow.pop %v1536
        %v1538 = vmul.f32 %v1535, 1.442695
        %v1539 = vpow.pop %v1538
        %v1540 = vsel %vm1164, %v1537, 0.0
        %1541 = vadd.xlane.f32.xlu0 %v1540
        %v1542 = vpop.xlane.xlu0 %1541
        %v1543 = vsel %vm1164, %v1539, 0.0
        %1544 = vadd.xlane.f32.xlu0 %v1543
        %v1545 = vpop.xlane.xlu0 %1544
        %v1546 = vrcp.pop %v1542
        %v1547 = vrcp.pop %v1545
        %v1548 = vmul.f32 %v1537, %v1546
        %v1549 = vmul.f32 %v1539, %v1547
        %v1550 = vpack.c.bf16 %v1549, %v1548
        %1551 = vrot.lane.b32.xlu0 %v1105, 40
        %v1552 = vpop.permute.xlu0 %1551
        %v1555 = vsel %vm1164, %v1550, 0
        %1557 = vmatprep.subr.bf16.mxu0 0
        %1558 = vmatpush1.bf16.msra.mxu0 %v1552
        %1559 = vmatprep.subr.bf16.mxu0 0
        %1560 = vmatpush1.bf16.msra.mxu0 0
        %1561 = vmatprep.subr.bf16.mxu0 0
        %1562 = vmatpush1.bf16.msra.mxu0 0
        %1563 = vmatprep.subr.bf16.mxu0 0
        %1564 = vmatpush1.bf16.msra.mxu0 0
        %1565 = vmatprep.subr.bf16.mxu0 0
        %1566 = vmatpush1.bf16.msra.mxu0 0
        %1567 = vmatprep.subr.bf16.mxu0 0
        %1568 = vmatpush1.bf16.msra.mxu0 0
        %1569 = vmatprep.subr.bf16.mxu0 0
        %1570 = vmatpush1.bf16.msra.mxu0 0
        %1571 = vmatprep.subr.bf16.mxu0 0
        %1572 = vmatpush1.bf16.msra.mxu0 0
        %1573 = vmatprep.subr.bf16.mxu0 0
        %1574 = vmatpush1.bf16.msra.mxu0 0
        %1575 = vmatprep.subr.bf16.mxu0 0
        %1576 = vmatpush1.bf16.msra.mxu0 0
        %1577 = vmatprep.subr.bf16.mxu0 0
        %1578 = vmatpush1.bf16.msra.mxu0 0
        %1579 = vmatprep.subr.bf16.mxu0 0
        %1580 = vmatpush1.bf16.msra.mxu0 0
        %1581 = vmatprep.subr.bf16.mxu0 0
        %1582 = vmatpush1.bf16.msra.mxu0 0
        %1583 = vmatprep.subr.bf16.mxu0 0
        %1584 = vmatpush1.bf16.msra.mxu0 0
        %1585 = vmatprep.subr.bf16.mxu0 0
        %1586 = vmatpush1.bf16.msra.mxu0 0
        %1587 = vmatprep.subr.bf16.mxu0 0
        %1588 = vmatpush1.bf16.msra.mxu0 0
        %1589 = vmatprep.mubr.bf16.mxu0 0
        %1590 = vmatmul.mubr.bf16.gmra.mrb[0].mxu0 %v1555
        %v1591 = vpop.f32.mrb[0].mxu0
        %v1592 = vadd.f32 0.0, %v1591
        %v1593 = vpop.f32.mrb[0].mxu0
        %v1594 = vpop.f32.mrb[0].mxu0
        %v1595 = vadd.f32 0.0, %v1594
        %v1596 = vpop.f32.mrb[0].mxu0
        %1597 = vdwg.mxu0
        %1600 = vrot.lane.b32.xlu0 %v1350, 8
        %v1601 = vpop.permute.xlu0 %1600
        %1602 = vrot.lane.b32.xlu0 %v1353, 8
        %v1603 = vpop.permute.xlu0 %1602
        %1608 = vrot.lane.b32.xlu0 %v1471, 16
        %v1609 = vpop.permute.xlu0 %1608
        %1610 = vrot.lane.b32.xlu0 %v1474, 16
        %v1611 = vpop.permute.xlu0 %1610
        %1616 = vrot.lane.b32.xlu0 %v1592, 24
        %v1617 = vpop.permute.xlu0 %1616
        %1618 = vrot.lane.b32.xlu0 %v1595, 24
        %v1619 = vpop.permute.xlu0 %1618
        %v1622 = vsel %vm1116, %v1229, %v1601
        %v1623 = vsel %vm1116, %v1232, %v1603
        %v1624 = vsel %vm1164, %v1622, %v1609
        %v1625 = vsel %vm1164, %v1623, %v1611
        %vm1626 = vcmask 195584
        %v1627 = vsel %vm1626, %v1624, %v1617
        %v1628 = vsel %vm1626, %v1625, %v1619
        %v1629 = vpack.c.bf16 %v1628, %v1627
        %v1630 = vld [vmem:[%s838] sm:$0xf]
        %v1631 = vld [vmem:[%s838 + $0x4] sm:$0xf]
        %v1632 = vld [vmem:[%s838 + $0x8] sm:$0xf]
        %v1633 = vld [vmem:[%s838 + $0xc] sm:$0xf]
        %v1634 = vld [vmem:[%s846] sm:$0x1]
        %v1636 = vlaneseq
        %v1637 = vshrl.u32 %v1636, 7
        %v1638 = vsub.s32 0, %v1637
        %v1639 = vrot.slane %v1634, %v1638
        %v1645 = vunpack.c.l.b16 %v1630
        %v1646 = vunpack.c.l.b16 %v1631
        %v1647 = vunpack.c.l.b16 %v1632
        %v1648 = vunpack.c.l.b16 %v1633
        %v1649 = vpack.c.b16 %v1646, %v1645
        %v1650 = vpack.c.b16 %v1648, %v1647
        %v1654 = vsel %vm1060, %v1629, 0
        %1656 = vmatprep.subr.bf16.mxu0 0
        %1657 = vmatpush1.bf16.msra.mxu0 %v1649
        %1658 = vmatprep.subr.bf16.mxu0 0
        %1659 = vmatpush1.bf16.msra.mxu0 %v1650
        %1660 = vmatprep.subr.bf16.mxu0 0
        %1661 = vmatpush1.bf16.msra.mxu0 0
        %1662 = vmatprep.subr.bf16.mxu0 0
        %1663 = vmatpush1.bf16.msra.mxu0 0
        %1664 = vmatprep.subr.bf16.mxu0 0
        %1665 = vmatpush1.bf16.msra.mxu0 0
        %1666 = vmatprep.subr.bf16.mxu0 0
        %1667 = vmatpush1.bf16.msra.mxu0 0
        %1668 = vmatprep.subr.bf16.mxu0 0
        %1669 = vmatpush1.bf16.msra.mxu0 0
        %1670 = vmatprep.subr.bf16.mxu0 0
        %1671 = vmatpush1.bf16.msra.mxu0 0
        %1672 = vmatprep.subr.bf16.mxu0 0
        %1673 = vmatpush1.bf16.msra.mxu0 0
        %1674 = vmatprep.subr.bf16.mxu0 0
        %1675 = vmatpush1.bf16.msra.mxu0 0
        %1676 = vmatprep.subr.bf16.mxu0 0
        %1677 = vmatpush1.bf16.msra.mxu0 0
        %1678 = vmatprep.subr.bf16.mxu0 0
        %1679 = vmatpush1.bf16.msra.mxu0 0
        %1680 = vmatprep.subr.bf16.mxu0 0
        %1681 = vmatpush1.bf16.msra.mxu0 0
        %1682 = vmatprep.subr.bf16.mxu0 0
        %1683 = vmatpush1.bf16.msra.mxu0 0
        %1684 = vmatprep.subr.bf16.mxu0 0
        %1685 = vmatpush1.bf16.msra.mxu0 0
        %1686 = vmatprep.subr.bf16.mxu0 0
        %1687 = vmatpush1.bf16.msra.mxu0 0
        %1688 = vmatprep.mubr.bf16.mxu0 0
        %1689 = vmatmul.mubr.bf16.gmra.mrb[0].mxu0 %v1654
        %v1690 = vpop.f32.mrb[0].mxu0
        %v1691 = vadd.f32 %v1639, %v1690
        %v1692 = vpop.f32.mrb[0].mxu0
        %v1693 = vpop.f32.mrb[0].mxu0
        %v1694 = vadd.f32 %v1639, %v1693
        %v1695 = vpop.f32.mrb[0].mxu0
        %1696 = vdwg.mxu0
        %v1697 = vadd.f32 %v1034, %v1691
        %v1698 = vadd.f32 %v1035, %v1694
        %v1699 = vld [vmem:[%s854] sm:$0x1]
        %v1700 = vld [vmem:[%s862] sm:$0x1]
        %v1701 = vsel %vm1060, %v1697, 0.0
        %1702 = vadd.xlane.f32.xlu0 %v1701
        %v1703 = vpop.xlane.xlu0 %1702
        %v1704 = vsel %vm1060, %v1698, 0.0
        %1705 = vadd.xlane.f32.xlu0 %v1704
        %v1706 = vpop.xlane.xlu0 %1705
        %v1707 = vrcp.pop 32.0
        %v1708 = vmul.f32 %v1703, %v1707
        %v1709 = vmul.f32 %v1706, %v1707
        %v1710 = vsub.f32 %v1697, %v1708
        %v1711 = vsub.f32 %v1698, %v1709
        %v1712 = vmul.f32 %v1710, %v1710
        %v1713 = vmul.f32 %v1711, %v1711
        %v1714 = vsel %vm1060, %v1712, 0.0
        %1715 = vadd.xlane.f32.xlu0 %v1714
        %v1716 = vpop.xlane.xlu0 %1715
        %v1717 = vsel %vm1060, %v1713, 0.0
        %1718 = vadd.xlane.f32.xlu0 %v1717
        %v1719 = vpop.xlane.xlu0 %1718
        %v1720 = vmul.f32 %v1716, %v1707
        %v1721 = vmul.f32 %v1719, %v1707
        %v1722 = vadd.f32 %v1720, 1e-05
        %v1723 = vadd.f32 %v1721, 1e-05
        %v1724 = vrsqrt.pop %v1722
        %v1725 = vrsqrt.pop %v1723
        %v1726 = vmul.f32 %v1710, %v1724
        %v1727 = vmul.f32 %v1711, %v1725
        %v1729 = vlaneseq
        %v1730 = vshrl.u32 %v1729, 7
        %v1731 = vsub.s32 0, %v1730
        %v1732 = vrot.slane %v1699, %v1731
        %v1734 = vmul.f32 %v1726, %v1732
        %v1735 = vmul.f32 %v1727, %v1732
        %v1737 = vlaneseq
        %v1738 = vshrl.u32 %v1737, 7
        %v1739 = vsub.s32 0, %v1738
        %v1740 = vrot.slane %v1700, %v1739
        %v1742 = vadd.f32 %v1734, %v1740
        %v1743 = vadd.f32 %v1735, %v1740
        %v1744 = vpack.c.bf16 %v1743, %v1742
        %v1745 = vld [vmem:[%s871] sm:$0xf]
        %v1746 = vld [vmem:[%s871 + $0x4] sm:$0xf]
        %v1747 = vld [vmem:[%s871 + $0x8] sm:$0xf]
        %v1748 = vld [vmem:[%s871 + $0xc] sm:$0xf]
        %v1749 = vld [vmem:[%s879] sm:$0x1]
        %v1751 = vlaneseq
        %v1752 = vshrl.u32 %v1751, 7
        %v1753 = vsub.s32 0, %v1752
        %v1754 = vrot.slane %v1749, %v1753
        %v1760 = vunpack.c.l.b16 %v1745
        %v1761 = vunpack.c.l.b16 %v1746
        %v1762 = vunpack.c.l.b16 %v1747
        %v1763 = vunpack.c.l.b16 %v1748
        %v1764 = vpack.c.b16 %v1761, %v1760
        %v1765 = vpack.c.b16 %v1763, %v1762
        %v1769 = vsel %vm1060, %v1744, 0
        %1771 = vmatprep.subr.bf16.mxu0 0
        %1772 = vmatpush1.bf16.msra.mxu0 %v1764
        %1773 = vmatprep.subr.bf16.mxu0 0
        %1774 = vmatpush1.bf16.msra.mxu0 %v1765
        %1775 = vmatprep.subr.bf16.mxu0 0
        %1776 = vmatpush1.bf16.msra.mxu0 0
        %1777 = vmatprep.subr.bf16.mxu0 0
        %1778 = vmatpush1.bf16.msra.mxu0 0
        %1779 = vmatprep.subr.bf16.mxu0 0
        %1780 = vmatpush1.bf16.msra.mxu0 0
        %1781 = vmatprep.subr.bf16.mxu0 0
        %1782 = vmatpush1.bf16.msra.mxu0 0
        %1783 = vmatprep.subr.bf16.mxu0 0
        %1784 = vmatpush1.bf16.msra.mxu0 0
        %1785 = vmatprep.subr.bf16.mxu0 0
        %1786 = vmatpush1.bf16.msra.mxu0 0
        %1787 = vmatprep.subr.bf16.mxu0 0
        %1788 = vmatpush1.bf16.msra.mxu0 0
        %1789 = vmatprep.subr.bf16.mxu0 0
        %1790 = vmatpush1.bf16.msra.mxu0 0
        %1791 = vmatprep.subr.bf16.mxu0 0
        %1792 = vmatpush1.bf16.msra.mxu0 0
        %1793 = vmatprep.subr.bf16.mxu0 0
        %1794 = vmatpush1.bf16.msra.mxu0 0
        %1795 = vmatprep.subr.bf16.mxu0 0
        %1796 = vmatpush1.bf16.msra.mxu0 0
        %1797 = vmatprep.subr.bf16.mxu0 0
        %1798 = vmatpush1.bf16.msra.mxu0 0
        %1799 = vmatprep.subr.bf16.mxu0 0
        %1800 = vmatpush1.bf16.msra.mxu0 0
        %1801 = vmatprep.subr.bf16.mxu0 0
        %1802 = vmatpush1.bf16.msra.mxu0 0
        %1803 = vmatprep.mubr.bf16.mxu0 0
        %1804 = vmatmul.mubr.bf16.gmra.mrb[0].mxu0 %v1769
        %v1805 = vpop.f32.mrb[0].mxu0
        %v1806 = vadd.f32 %v1754, %v1805
        %v1807 = vpop.f32.mrb[0].mxu0
        %v1808 = vpop.f32.mrb[0].mxu0
        %v1809 = vadd.f32 %v1754, %v1808
        %v1810 = vpop.f32.mrb[0].mxu0
        %1811 = vdwg.mxu0
        %v1812 = vmul.f32 %v1806, 0.5
        %v1813 = vmul.f32 %v1809, 0.5
        %v1814 = vmul.f32 %v1806, 0.70710677
        %v1815 = vmul.f32 %v1809, 0.70710677
        %vm1816 = vcmp.ge.f32.partialorder %v1814, 0.0
        %vm1817 = vcmp.ge.f32.partialorder %v1815, 0.0
        %v1818 = vsel %vm1816, 1.0, -1.0
        %v1819 = vsel %vm1817, 1.0, -1.0
        %v1820 = vand.u32 2147483647, %v1814
        %v1821 = vand.u32 2147483647, %v1815
        %v1822 = vmul.f32 %v1820, 0.3275911
        %v1823 = vmul.f32 %v1821, 0.3275911
        %v1824 = vadd.f32 %v1822, 1.0
        %v1825 = vadd.f32 %v1823, 1.0
        %v1826 = vrcp.pop %v1824
        %v1827 = vrcp.pop %v1825
        %v1828 = vmul.f32 %v1826, 1.0614054
        %v1829 = vmul.f32 %v1827, 1.0614054
        %v1830 = vadd.f32 %v1828, -1.4531521
        %v1831 = vadd.f32 %v1829, -1.4531521
        %v1832 = vmul.f32 %v1830, %v1826
        %v1833 = vmul.f32 %v1831, %v1827
        %v1834 = vadd.f32 %v1832, 1.4214138
        %v1835 = vadd.f32 %v1833, 1.4214138
        %v1836 = vmul.f32 %v1834, %v1826
        %v1837 = vmul.f32 %v1835, %v1827
        %v1838 = vadd.f32 %v1836, -0.28449672
        %v1839 = vadd.f32 %v1837, -0.28449672
        %v1840 = vmul.f32 %v1838, %v1826
        %v1841 = vmul.f32 %v1839, %v1827
        %v1842 = vadd.f32 %v1840, 0.2548296
        %v1843 = vadd.f32 %v1841, 0.2548296
        %v1844 = vmul.f32 %v1842, %v1826
        %v1845 = vmul.f32 %v1843, %v1827
        %v1846 = vsub.f32 0.0, %v1820
        %v1847 = vsub.f32 0.0, %v1821
        %v1848 = vmul.f32 %v1846, %v1820
        %v1849 = vmul.f32 %v1847, %v1821
        %v1850 = vmul.f32 %v1848, 1.442695
        %v1851 = vpow.pop %v1850
        %v1852 = vmul.f32 %v1849, 1.442695
        %v1853 = vpow.pop %v1852
        %v1854 = vmul.f32 %v1844, %v1851
        %v1855 = vmul.f32 %v1845, %v1853
        %v1856 = vsub.f32 1.0, %v1854
        %v1857 = vsub.f32 1.0, %v1855
        %v1858 = vmul.f32 %v1818, %v1856
        %v1859 = vmul.f32 %v1819, %v1857
        %v1860 = vadd.f32 %v1858, 1.0
        %v1861 = vadd.f32 %v1859, 1.0
        %v1862 = vmul.f32 %v1812, %v1860
        %v1863 = vmul.f32 %v1813, %v1861
        %v1864 = vpack.c.bf16 %v1863, %v1862
        %v1865 = vld [vmem:[%s888] sm:$0xf]
        %v1866 = vld [vmem:[%s888 + $0x4] sm:$0xf]
        %v1867 = vld [vmem:[%s888 + $0x8] sm:$0xf]
        %v1868 = vld [vmem:[%s888 + $0xc] sm:$0xf]
        %v1869 = vld [vmem:[%s896] sm:$0x1]
        %v1871 = vlaneseq
        %v1872 = vshrl.u32 %v1871, 7
        %v1873 = vsub.s32 0, %v1872
        %v1874 = vrot.slane %v1869, %v1873
        %v1880 = vunpack.c.l.b16 %v1865
        %v1881 = vunpack.c.l.b16 %v1866
        %v1882 = vunpack.c.l.b16 %v1867
        %v1883 = vunpack.c.l.b16 %v1868
        %v1884 = vpack.c.b16 %v1881, %v1880
        %v1885 = vpack.c.b16 %v1883, %v1882
        %v1889 = vsel %vm1060, %v1864, 0
        %1891 = vmatprep.subr.bf16.mxu0 0
        %1892 = vmatpush1.bf16.msra.mxu0 %v1884
        %1893 = vmatprep.subr.bf16.mxu0 0
        %1894 = vmatpush1.bf16.msra.mxu0 %v1885
        %1895 = vmatprep.subr.bf16.mxu0 0
        %1896 = vmatpush1.bf16.msra.mxu0 0
        %1897 = vmatprep.subr.bf16.mxu0 0
        %1898 = vmatpush1.bf16.msra.mxu0 0
        %1899 = vmatprep.subr.bf16.mxu0 0
        %1900 = vmatpush1.bf16.msra.mxu0 0
        %1901 = vmatprep.subr.bf16.mxu0 0
        %1902 = vmatpush1.bf16.msra.mxu0 0
        %1903 = vmatprep.subr.bf16.mxu0 0
        %1904 = vmatpush1.bf16.msra.mxu0 0
        %1905 = vmatprep.subr.bf16.mxu0 0
        %1906 = vmatpush1.bf16.msra.mxu0 0
        %1907 = vmatprep.subr.bf16.mxu0 0
        %1908 = vmatpush1.bf16.msra.mxu0 0
        %1909 = vmatprep.subr.bf16.mxu0 0
        %1910 = vmatpush1.bf16.msra.mxu0 0
        %1911 = vmatprep.subr.bf16.mxu0 0
        %1912 = vmatpush1.bf16.msra.mxu0 0
        %1913 = vmatprep.subr.bf16.mxu0 0
        %1914 = vmatpush1.bf16.msra.mxu0 0
        %1915 = vmatprep.subr.bf16.mxu0 0
        %1916 = vmatpush1.bf16.msra.mxu0 0
        %1917 = vmatprep.subr.bf16.mxu0 0
        %1918 = vmatpush1.bf16.msra.mxu0 0
        %1919 = vmatprep.subr.bf16.mxu0 0
        %1920 = vmatpush1.bf16.msra.mxu0 0
        %1921 = vmatprep.subr.bf16.mxu0 0
        %1922 = vmatpush1.bf16.msra.mxu0 0
        %1923 = vmatprep.mubr.bf16.mxu0 0
        %1924 = vmatmul.mubr.bf16.gmra.mrb[0].mxu0 %v1889
        %v1925 = vpop.f32.mrb[0].mxu0
        %v1926 = vadd.f32 %v1874, %v1925
        %v1927 = vpop.f32.mrb[0].mxu0
        %v1928 = vpop.f32.mrb[0].mxu0
        %v1929 = vadd.f32 %v1874, %v1928
        %v1930 = vpop.f32.mrb[0].mxu0
        %1931 = vdwg.mxu0
        %v1932 = vadd.f32 %v1742, %v1926
        %v1933 = vadd.f32 %v1743, %v1929
        %v1934 = vld [vmem:[%s904] sm:$0x1]
        %v1935 = vld [vmem:[%s912] sm:$0x1]
        %v1936 = vsel %vm1060, %v1932, 0.0
        %1937 = vadd.xlane.f32.xlu0 %v1936
        %v1938 = vpop.xlane.xlu0 %1937
        %v1939 = vsel %vm1060, %v1933, 0.0
        %1940 = vadd.xlane.f32.xlu0 %v1939
        %v1941 = vpop.xlane.xlu0 %1940
        %v1942 = vmul.f32 %v1938, %v1707
        %v1943 = vmul.f32 %v1941, %v1707
        %v1944 = vsub.f32 %v1932, %v1942
        %v1945 = vsub.f32 %v1933, %v1943
        %v1946 = vmul.f32 %v1944, %v1944
        %v1947 = vmul.f32 %v1945, %v1945
        %v1948 = vsel %vm1060, %v1946, 0.0
        %1949 = vadd.xlane.f32.xlu0 %v1948
        %v1950 = vpop.xlane.xlu0 %1949
        %v1951 = vsel %vm1060, %v1947, 0.0
        %1952 = vadd.xlane.f32.xlu0 %v1951
        %v1953 = vpop.xlane.xlu0 %1952
        %v1954 = vmul.f32 %v1950, %v1707
        %v1955 = vmul.f32 %v1953, %v1707
        %v1956 = vadd.f32 %v1954, 1e-05
        %v1957 = vadd.f32 %v1955, 1e-05
        %v1958 = vrsqrt.pop %v1956
        %v1959 = vrsqrt.pop %v1957
        %v1960 = vmul.f32 %v1944, %v1958
        %v1961 = vmul.f32 %v1945, %v1959
        %v1963 = vlaneseq
        %v1964 = vshrl.u32 %v1963, 7
        %v1965 = vsub.s32 0, %v1964
        %v1966 = vrot.slane %v1934, %v1965
        %v1968 = vmul.f32 %v1960, %v1966
        %v1969 = vmul.f32 %v1961, %v1966
        %v1971 = vlaneseq
        %v1972 = vshrl.u32 %v1971, 7
        %v1973 = vsub.s32 0, %v1972
        %v1974 = vrot.slane %v1935, %v1973
        %v1976 = vadd.f32 %v1968, %v1974
        %v1977 = vadd.f32 %v1969, %v1974
        %1978 = vst.msk [vmem:[#allocation2] sm:$0xff] %vm1060, %v1976
        %1979 = vst.msk [vmem:[#allocation2 + $0x8] sm:$0xff] %vm1060, %v1977
        %p1980 = scmp.eq.s32.totalorder %s60, 1
        // Predicated region
        $region153: #{tpu_custom_call.1} parent=83 // pred_check
          %p1981 = pneg %p1980
        $region154: #{tpu_custom_call.1} parent=83 // pred_check_branch
          %1983 = sbr.rel (%p1981) target = $region156
        $region155: #{tpu_custom_call.1} parent=83 // pred_region
          %v1984 = vld [vmem:[#allocation26] sm:$0x1]
          %v1985 = vld [vmem:[#allocation27] sm:$0x1]
          %v1986 = vsel %vm1060, %v1976, 0.0
          %1987 = vadd.xlane.f32.xlu0 %v1986
          %v1988 = vpop.xlane.xlu0 %1987
          %v1989 = vsel %vm1060, %v1977, 0.0
          %1990 = vadd.xlane.f32.xlu0 %v1989
          %v1991 = vpop.xlane.xlu0 %1990
          %v1992 = vmul.f32 %v1988, %v1707
          %v1993 = vmul.f32 %v1991, %v1707
          %v1994 = vsub.f32 %v1976, %v1992
          %v1995 = vsub.f32 %v1977, %v1993
          %v1996 = vmul.f32 %v1994, %v1994
          %v1997 = vmul.f32 %v1995, %v1995
          %v1998 = vsel %vm1060, %v1996, 0.0
          %1999 = vadd.xlane.f32.xlu0 %v1998
          %v2000 = vpop.xlane.xlu0 %1999
          %v2001 = vsel %vm1060, %v1997, 0.0
          %2002 = vadd.xlane.f32.xlu0 %v2001
          %v2003 = vpop.xlane.xlu0 %2002
          %v2004 = vmul.f32 %v2000, %v1707
          %v2005 = vmul.f32 %v2003, %v1707
          %v2006 = vadd.f32 %v2004, 1e-05
          %v2007 = vadd.f32 %v2005, 1e-05
          %v2008 = vrsqrt.pop %v2006
          %v2009 = vrsqrt.pop %v2007
          %v2010 = vmul.f32 %v1994, %v2008
          %v2011 = vmul.f32 %v1995, %v2009
          %v2013 = vlaneseq
          %v2014 = vshrl.u32 %v2013, 7
          %v2015 = vsub.s32 0, %v2014
          %v2016 = vrot.slane %v1984, %v2015
          %v2018 = vmul.f32 %v2010, %v2016
          %v2019 = vmul.f32 %v2011, %v2016
          %v2021 = vlaneseq
          %v2022 = vshrl.u32 %v2021, 7
          %v2023 = vsub.s32 0, %v2022
          %v2024 = vrot.slane %v1985, %v2023
          %v2026 = vadd.f32 %v2018, %v2024
          %v2027 = vadd.f32 %v2019, %v2024
          %v2028 = vlaneseq
          %v2029 = vshrl.u32 %v2028, 7
          %v2030 = vadd.s32 %v2029, 8
          %vm2031 = vcmp.lt.s32.totalorder %v2029, 9
          %vm2032 = vcmp.lt.s32.totalorder %v2030, 9
          %v2033 = vsel %vm2031, 1, 0
          %v2034 = vsel %vm2032, 1, 0
          %v2035 = vcvt.s32.f32 %v2033
          %v2036 = vcvt.s32.f32 %v2034
          %v2037 = vmul.f32 %v2026, %v2035
          %v2038 = vmul.f32 %v2027, %v2036
          %v2039 = vsel %vm1060, %v2037, 0.0
          %v2040 = vsel %vm1060, %v2038, 0.0
          %v2041 = vadd.f32 %v2039, %v2040
          %v2042 = vrot.slane %v2041, 4
          %v2043 = vadd.f32 %v2041, %v2042
          %v2044 = vrot.slane %v2043, 2
          %v2045 = vadd.f32 %v2043, %v2044
          %v2046 = vrot.slane %v2045, 1
          %v2047 = vadd.f32 %v2045, %v2046
          %v2048 = vmul.f32 %v2047, 0.11111111
          %vm2049 = vcmask 253952
          %2050 = vst.msk [vmem:[%s1023] sm:$0x1] %vm2049, %v2048
        $region156: #{tpu_custom_call.1} parent=83 // pred_fallthru
          _
        %s2051 = sand.u32 %s481, 1
        %s2052 = scalar_lea.sflag [#allocation5], %s2051
        %s2053 = sand.u32 %s481, 1
        %s2054 = scalar_lea.vmem [#allocation29], %s2053
        // Predicated region
        $region157: #{tpu_custom_call.1} parent=83 // pred_check
          %p2055 = pneg %p491
        $region158: #{tpu_custom_call.1} parent=83 // pred_check_branch
          %2057 = sbr.rel (%p2055) target = $region160
        $region159: #{tpu_custom_call.1} parent=83 // pred_region
          %s2059 = ssub.s32 16, 16
          %2060 = vsyncadd %s2052, %s2059
          %s2061 = smul.addr %s59, 16
          %s2062 = scalar_lea.hbm %s16, %s2061
          %s2064 = sshll.u32 %s2054, 4
          %s2065 = int_to_ptr.vmem [resolvable:$true] %s2064
          %2067 = dma.vmem_to_hbm [thread:$0]  %s2065, 16, %s2062, %s2052
        $region160: #{tpu_custom_call.1} parent=83 // pred_fallthru
          _
      $region84: #{tpu_custom_call.1} parent=5 // pred_fallthru
        _
      %p2068 = scmp.le.s32.totalorder 2, %s50
      // Predicated region
      $region161: #{tpu_custom_call.1} parent=5 // pred_check
        %p2069 = pneg %p2068
      $region162: #{tpu_custom_call.1} parent=5 // pred_check_branch
        %2071 = sbr.rel (%p2069) target = $region164
      $region163: #{tpu_custom_call.1} parent=5 // pred_region
        %s2072 = ssub.s32 %s50, 2
        // Predicated region
        $region165: #{tpu_custom_call.1} parent=163 // pred_check
          %p2073 = pneg %p497
        $region166: #{tpu_custom_call.1} parent=163 // pred_check_branch
          %2075 = sbr.rel (%p2073) target = $region168
        $region167: #{tpu_custom_call.1} parent=163 // pred_region
          %s2076 = sand.u32 %s482, 1
          %s2077 = scalar_lea.sflag [#allocation5], %s2076
          %s2078 = sand.u32 %s482, 1
          %s2079 = scalar_lea.vmem [#allocation29], %s2078
          %2080 = dma.done %s2077, 16
        $region168: #{tpu_custom_call.1} parent=163 // pred_fallthru
          _
      $region164: #{tpu_custom_call.1} parent=5 // pred_fallthru
        _
    $region6: #{tpu_custom_call.1} parent=1 // loop_footer
      %s54 = sadd.s32 1, %s50
    $region7: #{tpu_custom_call.1} parent=1 // loop_footer_branch
      %49 = sbr.rel target = $region3
    $region8: #{tpu_custom_call.1} parent=1 // loop_exit
      _
    %2081 = vsyncpa [#allocation4], 1
    %s2082 = scalar_lea.sflag [#allocation4], 1
    %2083 = vsyncpa %s2082, 1
    %2084 = vsyncpa [#allocation7], 1
    %s2085 = scalar_lea.sflag [#allocation7], 1
    %2086 = vsyncpa %s2085, 1
    %2087 = vsyncpa [#allocation10], 1
    %s2088 = scalar_lea.sflag [#allocation10], 1
    %2089 = vsyncpa %s2088, 1
    %2090 = vsyncpa [#allocation13], 1
    %s2091 = scalar_lea.sflag [#allocation13], 1
    %2092 = vsyncpa %s2091, 1
    %2093 = vsyncpa [#allocation16], 1
    %s2094 = scalar_lea.sflag [#allocation16], 1
    %2095 = vsyncpa %s2094, 1
    %2096 = vsyncpa [#allocation19], 1
    %s2097 = scalar_lea.sflag [#allocation19], 1
    %2098 = vsyncpa %s2097, 1
    %2099 = vsyncpa [#allocation22], 1
    %s2100 = scalar_lea.sflag [#allocation22], 1
    %2101 = vsyncpa %s2100, 1
    %2102 = vsyncpa [#allocation25], 1
    %s2103 = scalar_lea.sflag [#allocation25], 1
    %2104 = vsyncpa %s2103, 1
    %2105 = vsyncpa [#allocation28], 1
    %2106 = vsyncpa [#allocation5], 1
    %s2107 = scalar_lea.sflag [#allocation5], 1
    %2108 = vsyncpa %s2107, 1

</llo_original>
